<compile_context>
chip_gen: v7x
topology: tpu7x:2x2x1
jax: 0.10.0
libtpu: 0.0.40
codegen_flags: <defaults>
</compile_context>

<pallas_src>
import functools

import jax
import jax.numpy as jnp
import numpy as np
from jax.experimental import pallas as pl
from jax.experimental.pallas import tpu as pltpu


# ----------------------------------------------------------------------------
# Fused kernel: projections + softmax + content & position lambdas + apply.
# One grid step = one image (full N), so the content-lambda reduction over N
# stays inside a single step.
# ----------------------------------------------------------------------------
def lambda_fused_kernel(x_ref, w_ref, b_ref, eb_ref, m_ref, o_ref, *,
                        heads, dim_k, dim_v, H, W, r):
    N = H * W
    pad = (r - 1) // 2
    r2 = r * r
    cq = heads * dim_k

    # ---- fused 1x1-conv projections (MXU, bf16 operands, f32 accumulation) ----
    y = jnp.dot(w_ref[...], x_ref[0], preferred_element_type=jnp.float32)
    y = y + b_ref[...]                               # (Cout, N) f32, folded-BN bias

    q = y[:cq]                                       # (heads*dim_k, N)
    k = y[cq:cq + dim_k]                             # (dim_k, N)
    v = y[cq + dim_k:cq + dim_k + dim_v]             # (dim_v, N)
    q_bf = q.astype(jnp.bfloat16)

    # ---- softmax over key depth (f32 VPU/EUP; keep elementwise off bf16) ----
    k = k - jnp.max(k, axis=0, keepdims=True)
    ek = jnp.exp(k)
    ks = ek * pl.reciprocal(jnp.sum(ek, axis=0, keepdims=True), approx=True)

    # ---- content lambda: clT[vv, kk] = sum_n v[vv, n] * ks[kk, n]   (MXU) ----
    clT = jax.lax.dot_general(
        v.astype(jnp.bfloat16), ks.astype(jnp.bfloat16),
        (((1,), (1,)), ((), ())),
        preferred_element_type=jnp.float32)          # (dim_v, dim_k)

    # block-diag(clT): all heads' content applies fused into ONE MXU matmul
    # producing a single dense (C, N) result.
    zero_blk = jnp.zeros((dim_v, dim_k), jnp.float32)
    bd = jnp.concatenate(
        [jnp.concatenate([clT if hh == h else zero_blk for hh in range(heads)],
                         axis=1)
         for h in range(heads)], axis=0)             # (C, cq)
    content = jnp.dot(bd.astype(jnp.bfloat16), q_bf,
                      preferred_element_type=jnp.float32)   # (C, N)

    # ---- position lambdas ----
    # qe[p*heads + h, n] = sum_k emb[k, p] * q[h*dim_k + k, n]
    # (one MXU matmul over a host-built block matrix; replaces per-(head,dim_v)
    #  VPU reductions and their sublane-masked stores)
    qe = jnp.dot(eb_ref[...], q_bf, preferred_element_type=jnp.float32)  # (r2*heads, N)

    # Accumulate the position output tap-by-tap: one XLU lane roll of v per tap,
    # masked by the precomputed boundary row.  For valid (unmasked) positions
    # the flattened source index is exactly n + s, so a lane rotation is exact.
    mask = m_ref[...]                                # (r2, N) 0/1
    pos_heads = [jnp.zeros((dim_v, N), jnp.float32) for _ in range(heads)]
    for p in range(r2):
        dy, dx = p // r, p % r
        s = (dy - pad) * W + (dx - pad)              # source offset: n_src = n + s
        t = (-s) % N
        rolled = v if t == 0 else pltpu.roll(v, t, axis=1)  # rolled[:, n] = v[:, (n+s) % N]
        tap_v = rolled * mask[p:p + 1, :]            # zero out-of-image taps
        for h in range(heads):
            qe_row = qe[p * heads + h:p * heads + h + 1, :]   # (1, N)
            pos_heads[h] = pos_heads[h] + qe_row * tap_v
    pos = jnp.concatenate(pos_heads, axis=0)         # (C, N), head-major rows

    # single dense, lane-aligned store of the whole output tile
    o_ref[0] = (content + pos).astype(o_ref.dtype)


# ----------------------------------------------------------------------------
# Wrapper: BN folding, host-side emb/mask preparation, pallas_call plumbing.
# ----------------------------------------------------------------------------
def lambda_layer_forward(x, params, *, heads, dim_k, r):
    B, C, H, W = x.shape
    dim_v = C // heads
    N = H * W
    pad = (r - 1) // 2
    r2 = r * r
    cq = heads * dim_k
    cout = cq + dim_k + dim_v
    eps = 1e-5

    # fold eval-mode BatchNorm into the (bias-free) 1x1 conv weights
    def fold_bn(w, gamma, beta, mean, var):
        scale = gamma / jnp.sqrt(var + eps)
        return w * scale[:, None], beta - mean * scale

    wq_f, bq_f = fold_bn(params['wq'], params['bnq_gamma'], params['bnq_beta'],
                         params['bnq_mean'], params['bnq_var'])
    wk_f, bk_f = params['wk'], jnp.zeros((dim_k,), jnp.float32)
    wv_f, bv_f = fold_bn(params['wv'], params['bnv_gamma'], params['bnv_beta'],
                         params['bnv_mean'], params['bnv_var'])

    w_all = jnp.concatenate([wq_f, wk_f, wv_f], axis=0).astype(jnp.bfloat16)  # (Cout, C)
    b_all = jnp.concatenate([bq_f, bk_f, bv_f]).astype(jnp.float32)[:, None]  # (Cout, 1)

    x_flat = x.reshape(B, C, N).astype(jnp.bfloat16)   # channel-major, lane-dense N

    # host-built block-embedding matrix: eb[p*heads+h, h*dim_k+kk] = emb[kk, p]
    emb_flat = params['emb'].reshape(dim_k, r2).astype(jnp.float32)
    eye_h = jnp.eye(heads, dtype=jnp.float32)
    eb = jnp.einsum('kp,gh->pghk', emb_flat, eye_h)
    eb = eb.reshape(r2 * heads, cq).astype(jnp.bfloat16)

    # boundary mask for the r x r taps (tiny: r2 x N, host numpy, fetched once)
    yy, xx = np.meshgrid(np.arange(H), np.arange(W), indexing='ij')
    yy = yy.reshape(-1)
    xx = xx.reshape(-1)
    mask_np = np.zeros((r2, N), np.float32)
    for dy in range(r):
        for dx in range(r):
            sy = yy + dy - pad
            sx = xx + dx - pad
            mask_np[dy * r + dx] = ((sy >= 0) & (sy < H) &
                                    (sx >= 0) & (sx < W)).astype(np.float32)
    mask = jnp.asarray(mask_np)

    flops = B * 2 * N * (cout * C + dim_v * dim_k + C * cq
                         + r2 * heads * cq + r2 * heads * dim_v)
    bytes_accessed = (x_flat.size * 2 + B * C * N * 4 + w_all.size * 2
                      + b_all.size * 4 + eb.size * 2 + mask.size * 4)

    out = pl.pallas_call(
        functools.partial(lambda_fused_kernel, heads=heads, dim_k=dim_k,
                          dim_v=dim_v, H=H, W=W, r=r),
        out_shape=jax.ShapeDtypeStruct((B, C, N), jnp.float32),
        grid=(B,),
        in_specs=[
            pl.BlockSpec((1, C, N), lambda b: (b, 0, 0)),
            pl.BlockSpec((cout, C), lambda b: (0, 0)),
            pl.BlockSpec((cout, 1), lambda b: (0, 0)),
            pl.BlockSpec((r2 * heads, cq), lambda b: (0, 0)),
            pl.BlockSpec((r2, N), lambda b: (0, 0)),
        ],
        out_specs=pl.BlockSpec((1, C, N), lambda b: (b, 0, 0)),
        compiler_params=pltpu.CompilerParams(
            dimension_semantics=("parallel",)),
        cost_estimate=pl.CostEstimate(flops=int(flops),
                                      transcendentals=int(B * dim_k * N),
                                      bytes_accessed=int(bytes_accessed)),
    )(x_flat, w_all, b_all, eb, mask)

    return out.reshape(B, C, H, W)


# ----------------------------------------------------------------------------
# Pure-JAX reference (mirrors the PyTorch forward with eval-mode BatchNorm)
# ----------------------------------------------------------------------------
def reference_forward(x, params, *, heads, dim_k, r):
    B, C, H, W = x.shape
    dim_v = C // heads
    N = H * W
    pad = (r - 1) // 2
    eps = 1e-5

    def conv1x1(x, w):
        return jnp.einsum('oc,bchw->bohw', w, x)

    def bn(t, gamma, beta, mean, var):
        s = gamma / jnp.sqrt(var + eps)
        return t * s[None, :, None, None] + (beta - mean * s)[None, :, None, None]

    q = bn(conv1x1(x, params['wq']), params['bnq_gamma'], params['bnq_beta'],
           params['bnq_mean'], params['bnq_var'])
    k = conv1x1(x, params['wk'])
    v = bn(conv1x1(x, params['wv']), params['bnv_gamma'], params['bnv_beta'],
           params['bnv_mean'], params['bnv_var'])

    emb = params['emb'].reshape(dim_k, r * r)
    v_pad = jnp.pad(v, ((0, 0), (0, 0), (pad, pad), (pad, pad)))
    patches = jnp.stack(
        [v_pad[:, :, dy:dy + H, dx:dx + W] for dy in range(r) for dx in range(r)],
        axis=2)
    plam = jnp.einsum('kp,bvphw->bkvhw', emb, patches).reshape(B, dim_k, dim_v, N)

    ks = jax.nn.softmax(k, axis=1).reshape(B, dim_k, N)
    qs = q.reshape(B, heads, dim_k, N)
    vs = v.reshape(B, dim_v, N)
    cl = jnp.einsum('bkm,bvm->bkv', ks, vs)
    content = jnp.einsum('bhkn,bkv->bhvn', qs, cl)
    pos = jnp.einsum('bhkn,bkvn->bhvn', qs, plam)
    return (content + pos).reshape(B, C, H, W)


if __name__ == "__main__":
    # small shapes consistent with the module; N = H*W = 256 is lane-dense
    B, dim, H, W = 2, 8, 16, 16
    heads, dim_k, r = 4, 4, 5
    dim_v = dim // heads

    key = jax.random.PRNGKey(0)
    keys = jax.random.split(key, 12)

    params = {
        'wq': jax.random.normal(keys[0], (dim_k * heads, dim), jnp.float32) * 0.2,
        'wk': jax.random.normal(keys[1], (dim_k, dim), jnp.float32) * 0.2,
        'wv': jax.random.normal(keys[2], (dim_v, dim), jnp.float32) * 0.2,
        'emb': jax.random.normal(keys[3], (dim_k, 1, 1, r, r), jnp.float32),
        # eval-mode BatchNorm parameters (deterministic, non-trivial)
        'bnq_gamma': 0.5 + jax.random.uniform(keys[4], (dim_k * heads,), jnp.float32),
        'bnq_beta': jax.random.normal(keys[5], (dim_k * heads,), jnp.float32) * 0.1,
        'bnq_mean': jax.random.normal(keys[6], (dim_k * heads,), jnp.float32) * 0.1,
        'bnq_var': 0.5 + jax.random.uniform(keys[7], (dim_k * heads,), jnp.float32),
        'bnv_gamma': 0.5 + jax.random.uniform(keys[8], (dim_v,), jnp.float32),
        'bnv_beta': jax.random.normal(keys[9], (dim_v,), jnp.float32) * 0.1,
        'bnv_mean': jax.random.normal(keys[10], (dim_v,), jnp.float32) * 0.1,
        'bnv_var': 0.5 + jax.random.uniform(keys[11], (dim_v,), jnp.float32),
    }

    x = jax.random.normal(jax.random.PRNGKey(42), (B, dim, H, W), jnp.float32)

    out = lambda_layer_forward(x, params, heads=heads, dim_k=dim_k, r=r)
    out = jax.block_until_ready(out)

    ref = reference_forward(x, params, heads=heads, dim_k=dim_k, r=r)
    ref = jax.block_until_ready(ref)

    err = float(jnp.max(jnp.abs(out - ref)))
    scale = float(jnp.max(jnp.abs(ref)))
    rel = err / max(scale, 1.0)
    assert out.shape == (B, dim, H, W)
    # bf16 MXU operands + approx-reciprocal softmax denominator -> relative check
    assert np.isfinite(err) and rel < 2e-2, f"relative error too large: {rel} (abs {err})"
    print("KERNEL_OK")
</pallas_src>

<mosaic_0001>
module attributes {stable_mosaic.version = 11 : i64} {
  func.func @lambda_fused_kernel(%arg0: i32, %arg1: memref<1x8x256xbf16, #tpu.memory_space<vmem>>, %arg2: memref<22x8xbf16, #tpu.memory_space<vmem>>, %arg3: memref<22x1xf32, #tpu.memory_space<vmem>>, %arg4: memref<100x16xbf16, #tpu.memory_space<vmem>>, %arg5: memref<25x256xf32, #tpu.memory_space<vmem>>, %arg6: memref<1x8x256xf32, #tpu.memory_space<vmem>>) attributes {dimension_semantics = [#tpu.dimension_semantics<parallel>], iteration_bounds = array<i64: 2>, scalar_prefetch = 0 : i64, scratch_operands = 0 : i64, tpu.core_type = #tpu.core_type<tc>, window_params = [{transform_indices = @transform_0, window_bounds = array<i64: 1, 8, 256>}, {pipeline_mode = #tpu.pipeline_mode<synchronous>, transform_indices = @transform_1, window_bounds = array<i64: 22, 8>}, {pipeline_mode = #tpu.pipeline_mode<synchronous>, transform_indices = @transform_2, window_bounds = array<i64: 22, 1>}, {pipeline_mode = #tpu.pipeline_mode<synchronous>, transform_indices = @transform_3, window_bounds = array<i64: 100, 16>}, {pipeline_mode = #tpu.pipeline_mode<synchronous>, transform_indices = @transform_4, window_bounds = array<i64: 25, 256>}, {transform_indices = @transform_5, window_bounds = array<i64: 1, 8, 256>}]} {
    %c0 = arith.constant 0 : index
    %c0_0 = arith.constant 0 : index
    %0 = vector.load %arg2[%c0, %c0_0] : memref<22x8xbf16, #tpu.memory_space<vmem>>, vector<22x8xbf16>
    %c0_1 = arith.constant 0 : index
    %c0_2 = arith.constant 0 : index
    %c0_3 = arith.constant 0 : index
    %1 = vector.load %arg1[%c0_1, %c0_2, %c0_3] : memref<1x8x256xbf16, #tpu.memory_space<vmem>>, vector<1x8x256xbf16>
    %2 = vector.shape_cast %1 : vector<1x8x256xbf16> to vector<8x256xbf16>
    %cst = arith.constant dense<0.000000e+00> : vector<22x256xf32>
    %3 = tpu.matmul %0, %2, %cst {dimension_numbers = #tpu.dot_dimension_numbers<[1], [0], [0], [1], [0, 0, 1, 1], [], []>} : vector<22x8xbf16>, vector<8x256xbf16>, vector<22x256xf32> -> vector<22x256xf32>
    %c0_4 = arith.constant 0 : index
    %c0_5 = arith.constant 0 : index
    %4 = vector.load %arg3[%c0_4, %c0_5] : memref<22x1xf32, #tpu.memory_space<vmem>>, vector<22x1xf32>
    %5 = vector.broadcast %4 : vector<22x1xf32> to vector<22x256xf32>
    %6 = arith.addf %3, %5 : vector<22x256xf32>
    %7 = vector.extract_strided_slice %6 {offsets = [0, 0], sizes = [16, 256], strides = [1, 1]} : vector<22x256xf32> to vector<16x256xf32>
    %8 = vector.extract_strided_slice %6 {offsets = [16, 0], sizes = [4, 256], strides = [1, 1]} : vector<22x256xf32> to vector<4x256xf32>
    %9 = vector.extract_strided_slice %6 {offsets = [20, 0], sizes = [2, 256], strides = [1, 1]} : vector<22x256xf32> to vector<2x256xf32>
    %10 = arith.truncf %7 : vector<16x256xf32> to vector<16x256xbf16>
    %cst_6 = arith.constant dense<0xFF800000> : vector<256xf32>
    %11 = vector.multi_reduction <maximumf>, %8, %cst_6 [0] : vector<4x256xf32> to vector<256xf32>
    %12 = vector.shape_cast %11 : vector<256xf32> to vector<1x256xf32>
    %13 = vector.broadcast %12 : vector<1x256xf32> to vector<4x256xf32>
    %14 = arith.subf %8, %13 : vector<4x256xf32>
    %15 = math.exp %14 : vector<4x256xf32>
    %cst_7 = arith.constant dense<0.000000e+00> : vector<256xf32>
    %16 = vector.multi_reduction <add>, %15, %cst_7 [0] : vector<4x256xf32> to vector<256xf32>
    %17 = vector.shape_cast %16 : vector<256xf32> to vector<1x256xf32>
    %18 = tpu.reciprocal %17 {approx = true} : vector<1x256xf32> -> vector<1x256xf32>
    %19 = vector.broadcast %18 : vector<1x256xf32> to vector<4x256xf32>
    %20 = arith.mulf %15, %19 : vector<4x256xf32>
    %21 = arith.truncf %9 : vector<2x256xf32> to vector<2x256xbf16>
    %22 = arith.truncf %20 : vector<4x256xf32> to vector<4x256xbf16>
    %cst_8 = arith.constant dense<0.000000e+00> : vector<2x4xf32>
    %23 = tpu.matmul %21, %22, %cst_8 {dimension_numbers = #tpu.dot_dimension_numbers<[1], [1], [0], [0], [0, 0, 1, 0], [], []>} : vector<2x256xbf16>, vector<4x256xbf16>, vector<2x4xf32> -> vector<2x4xf32>
    %cst_9 = arith.constant 0.000000e+00 : f32
    %24 = vector.broadcast %cst_9 : f32 to vector<2x4xf32>
    %25 = tpu.concatenate %23, %24, %24, %24 in 1 : vector<2x4xf32>, vector<2x4xf32>, vector<2x4xf32>, vector<2x4xf32> -> vector<2x16xf32>
    %26 = tpu.concatenate %24, %23, %24, %24 in 1 : vector<2x4xf32>, vector<2x4xf32>, vector<2x4xf32>, vector<2x4xf32> -> vector<2x16xf32>
    %27 = tpu.concatenate %24, %24, %23, %24 in 1 : vector<2x4xf32>, vector<2x4xf32>, vector<2x4xf32>, vector<2x4xf32> -> vector<2x16xf32>
    %28 = tpu.concatenate %24, %24, %24, %23 in 1 : vector<2x4xf32>, vector<2x4xf32>, vector<2x4xf32>, vector<2x4xf32> -> vector<2x16xf32>
    %29 = tpu.concatenate %25, %26, %27, %28 in 0 : vector<2x16xf32>, vector<2x16xf32>, vector<2x16xf32>, vector<2x16xf32> -> vector<8x16xf32>
    %30 = arith.truncf %29 : vector<8x16xf32> to vector<8x16xbf16>
    %cst_10 = arith.constant dense<0.000000e+00> : vector<8x256xf32>
    %31 = tpu.matmul %30, %10, %cst_10 {dimension_numbers = #tpu.dot_dimension_numbers<[1], [0], [0], [1], [0, 0, 1, 1], [], []>} : vector<8x16xbf16>, vector<16x256xbf16>, vector<8x256xf32> -> vector<8x256xf32>
    %c0_11 = arith.constant 0 : index
    %c0_12 = arith.constant 0 : index
    %32 = vector.load %arg4[%c0_11, %c0_12] : memref<100x16xbf16, #tpu.memory_space<vmem>>, vector<100x16xbf16>
    %cst_13 = arith.constant dense<0.000000e+00> : vector<100x256xf32>
    %33 = tpu.matmul %32, %10, %cst_13 {dimension_numbers = #tpu.dot_dimension_numbers<[1], [0], [0], [1], [0, 0, 1, 1], [], []>} : vector<100x16xbf16>, vector<16x256xbf16>, vector<100x256xf32> -> vector<100x256xf32>
    %c0_14 = arith.constant 0 : index
    %c0_15 = arith.constant 0 : index
    %34 = vector.load %arg5[%c0_14, %c0_15] : memref<25x256xf32, #tpu.memory_space<vmem>>, vector<25x256xf32>
    %cst_16 = arith.constant 0.000000e+00 : f32
    %35 = vector.broadcast %cst_16 : f32 to vector<2x256xf32>
    %cst_17 = arith.constant 0.000000e+00 : f32
    %36 = vector.broadcast %cst_17 : f32 to vector<2x256xf32>
    %cst_18 = arith.constant 0.000000e+00 : f32
    %37 = vector.broadcast %cst_18 : f32 to vector<2x256xf32>
    %cst_19 = arith.constant 0.000000e+00 : f32
    %38 = vector.broadcast %cst_19 : f32 to vector<2x256xf32>
    %c34_i32 = arith.constant 34 : i32
    %39 = tpu.dynamic_rotate %9 by %c34_i32 dim 1 : vector<2x256xf32>, i32 -> vector<2x256xf32>
    %40 = vector.extract_strided_slice %34 {offsets = [0, 0], sizes = [1, 256], strides = [1, 1]} : vector<25x256xf32> to vector<1x256xf32>
    %41 = vector.broadcast %40 : vector<1x256xf32> to vector<2x256xf32>
    %42 = arith.mulf %39, %41 : vector<2x256xf32>
    %43 = vector.extract_strided_slice %33 {offsets = [0, 0], sizes = [1, 256], strides = [1, 1]} : vector<100x256xf32> to vector<1x256xf32>
    %44 = vector.broadcast %43 : vector<1x256xf32> to vector<2x256xf32>
    %45 = arith.mulf %44, %42 : vector<2x256xf32>
    %46 = arith.addf %35, %45 : vector<2x256xf32>
    %47 = vector.extract_strided_slice %33 {offsets = [1, 0], sizes = [1, 256], strides = [1, 1]} : vector<100x256xf32> to vector<1x256xf32>
    %48 = vector.broadcast %47 : vector<1x256xf32> to vector<2x256xf32>
    %49 = arith.mulf %48, %42 : vector<2x256xf32>
    %50 = arith.addf %36, %49 : vector<2x256xf32>
    %51 = vector.extract_strided_slice %33 {offsets = [2, 0], sizes = [1, 256], strides = [1, 1]} : vector<100x256xf32> to vector<1x256xf32>
    %52 = vector.broadcast %51 : vector<1x256xf32> to vector<2x256xf32>
    %53 = arith.mulf %52, %42 : vector<2x256xf32>
    %54 = arith.addf %37, %53 : vector<2x256xf32>
    %55 = vector.extract_strided_slice %33 {offsets = [3, 0], sizes = [1, 256], strides = [1, 1]} : vector<100x256xf32> to vector<1x256xf32>
    %56 = vector.broadcast %55 : vector<1x256xf32> to vector<2x256xf32>
    %57 = arith.mulf %56, %42 : vector<2x256xf32>
    %58 = arith.addf %38, %57 : vector<2x256xf32>
    %c33_i32 = arith.constant 33 : i32
    %59 = tpu.dynamic_rotate %9 by %c33_i32 dim 1 : vector<2x256xf32>, i32 -> vector<2x256xf32>
    %60 = vector.extract_strided_slice %34 {offsets = [1, 0], sizes = [1, 256], strides = [1, 1]} : vector<25x256xf32> to vector<1x256xf32>
    %61 = vector.broadcast %60 : vector<1x256xf32> to vector<2x256xf32>
    %62 = arith.mulf %59, %61 : vector<2x256xf32>
    %63 = vector.extract_strided_slice %33 {offsets = [4, 0], sizes = [1, 256], strides = [1, 1]} : vector<100x256xf32> to vector<1x256xf32>
    %64 = vector.broadcast %63 : vector<1x256xf32> to vector<2x256xf32>
    %65 = arith.mulf %64, %62 : vector<2x256xf32>
    %66 = arith.addf %46, %65 : vector<2x256xf32>
    %67 = vector.extract_strided_slice %33 {offsets = [5, 0], sizes = [1, 256], strides = [1, 1]} : vector<100x256xf32> to vector<1x256xf32>
    %68 = vector.broadcast %67 : vector<1x256xf32> to vector<2x256xf32>
    %69 = arith.mulf %68, %62 : vector<2x256xf32>
    %70 = arith.addf %50, %69 : vector<2x256xf32>
    %71 = vector.extract_strided_slice %33 {offsets = [6, 0], sizes = [1, 256], strides = [1, 1]} : vector<100x256xf32> to vector<1x256xf32>
    %72 = vector.broadcast %71 : vector<1x256xf32> to vector<2x256xf32>
    %73 = arith.mulf %72, %62 : vector<2x256xf32>
    %74 = arith.addf %54, %73 : vector<2x256xf32>
    %75 = vector.extract_strided_slice %33 {offsets = [7, 0], sizes = [1, 256], strides = [1, 1]} : vector<100x256xf32> to vector<1x256xf32>
    %76 = vector.broadcast %75 : vector<1x256xf32> to vector<2x256xf32>
    %77 = arith.mulf %76, %62 : vector<2x256xf32>
    %78 = arith.addf %58, %77 : vector<2x256xf32>
    %c32_i32 = arith.constant 32 : i32
    %79 = tpu.dynamic_rotate %9 by %c32_i32 dim 1 : vector<2x256xf32>, i32 -> vector<2x256xf32>
    %80 = vector.extract_strided_slice %34 {offsets = [2, 0], sizes = [1, 256], strides = [1, 1]} : vector<25x256xf32> to vector<1x256xf32>
    %81 = vector.broadcast %80 : vector<1x256xf32> to vector<2x256xf32>
    %82 = arith.mulf %79, %81 : vector<2x256xf32>
    %83 = vector.extract_strided_slice %33 {offsets = [8, 0], sizes = [1, 256], strides = [1, 1]} : vector<100x256xf32> to vector<1x256xf32>
    %84 = vector.broadcast %83 : vector<1x256xf32> to vector<2x256xf32>
    %85 = arith.mulf %84, %82 : vector<2x256xf32>
    %86 = arith.addf %66, %85 : vector<2x256xf32>
    %87 = vector.extract_strided_slice %33 {offsets = [9, 0], sizes = [1, 256], strides = [1, 1]} : vector<100x256xf32> to vector<1x256xf32>
    %88 = vector.broadcast %87 : vector<1x256xf32> to vector<2x256xf32>
    %89 = arith.mulf %88, %82 : vector<2x256xf32>
    %90 = arith.addf %70, %89 : vector<2x256xf32>
    %91 = vector.extract_strided_slice %33 {offsets = [10, 0], sizes = [1, 256], strides = [1, 1]} : vector<100x256xf32> to vector<1x256xf32>
    %92 = vector.broadcast %91 : vector<1x256xf32> to vector<2x256xf32>
    %93 = arith.mulf %92, %82 : vector<2x256xf32>
    %94 = arith.addf %74, %93 : vector<2x256xf32>
    %95 = vector.extract_strided_slice %33 {offsets = [11, 0], sizes = [1, 256], strides = [1, 1]} : vector<100x256xf32> to vector<1x256xf32>
    %96 = vector.broadcast %95 : vector<1x256xf32> to vector<2x256xf32>
    %97 = arith.mulf %96, %82 : vector<2x256xf32>
    %98 = arith.addf %78, %97 : vector<2x256xf32>
    %c31_i32 = arith.constant 31 : i32
    %99 = tpu.dynamic_rotate %9 by %c31_i32 dim 1 : vector<2x256xf32>, i32 -> vector<2x256xf32>
    %100 = vector.extract_strided_slice %34 {offsets = [3, 0], sizes = [1, 256], strides = [1, 1]} : vector<25x256xf32> to vector<1x256xf32>
    %101 = vector.broadcast %100 : vector<1x256xf32> to vector<2x256xf32>
    %102 = arith.mulf %99, %101 : vector<2x256xf32>
    %103 = vector.extract_strided_slice %33 {offsets = [12, 0], sizes = [1, 256], strides = [1, 1]} : vector<100x256xf32> to vector<1x256xf32>
    %104 = vector.broadcast %103 : vector<1x256xf32> to vector<2x256xf32>
    %105 = arith.mulf %104, %102 : vector<2x256xf32>
    %106 = arith.addf %86, %105 : vector<2x256xf32>
    %107 = vector.extract_strided_slice %33 {offsets = [13, 0], sizes = [1, 256], strides = [1, 1]} : vector<100x256xf32> to vector<1x256xf32>
    %108 = vector.broadcast %107 : vector<1x256xf32> to vector<2x256xf32>
    %109 = arith.mulf %108, %102 : vector<2x256xf32>
    %110 = arith.addf %90, %109 : vector<2x256xf32>
    %111 = vector.extract_strided_slice %33 {offsets = [14, 0], sizes = [1, 256], strides = [1, 1]} : vector<100x256xf32> to vector<1x256xf32>
    %112 = vector.broadcast %111 : vector<1x256xf32> to vector<2x256xf32>
    %113 = arith.mulf %112, %102 : vector<2x256xf32>
    %114 = arith.addf %94, %113 : vector<2x256xf32>
    %115 = vector.extract_strided_slice %33 {offsets = [15, 0], sizes = [1, 256], strides = [1, 1]} : vector<100x256xf32> to vector<1x256xf32>
    %116 = vector.broadcast %115 : vector<1x256xf32> to vector<2x256xf32>
    %117 = arith.mulf %116, %102 : vector<2x256xf32>
    %118 = arith.addf %98, %117 : vector<2x256xf32>
    %c30_i32 = arith.constant 30 : i32
    %119 = tpu.dynamic_rotate %9 by %c30_i32 dim 1 : vector<2x256xf32>, i32 -> vector<2x256xf32>
    %120 = vector.extract_strided_slice %34 {offsets = [4, 0], sizes = [1, 256], strides = [1, 1]} : vector<25x256xf32> to vector<1x256xf32>
    %121 = vector.broadcast %120 : vector<1x256xf32> to vector<2x256xf32>
    %122 = arith.mulf %119, %121 : vector<2x256xf32>
    %123 = vector.extract_strided_slice %33 {offsets = [16, 0], sizes = [1, 256], strides = [1, 1]} : vector<100x256xf32> to vector<1x256xf32>
    %124 = vector.broadcast %123 : vector<1x256xf32> to vector<2x256xf32>
    %125 = arith.mulf %124, %122 : vector<2x256xf32>
    %126 = arith.addf %106, %125 : vector<2x256xf32>
    %127 = vector.extract_strided_slice %33 {offsets = [17, 0], sizes = [1, 256], strides = [1, 1]} : vector<100x256xf32> to vector<1x256xf32>
    %128 = vector.broadcast %127 : vector<1x256xf32> to vector<2x256xf32>
    %129 = arith.mulf %128, %122 : vector<2x256xf32>
    %130 = arith.addf %110, %129 : vector<2x256xf32>
    %131 = vector.extract_strided_slice %33 {offsets = [18, 0], sizes = [1, 256], strides = [1, 1]} : vector<100x256xf32> to vector<1x256xf32>
    %132 = vector.broadcast %131 : vector<1x256xf32> to vector<2x256xf32>
    %133 = arith.mulf %132, %122 : vector<2x256xf32>
    %134 = arith.addf %114, %133 : vector<2x256xf32>
    %135 = vector.extract_strided_slice %33 {offsets = [19, 0], sizes = [1, 256], strides = [1, 1]} : vector<100x256xf32> to vector<1x256xf32>
    %136 = vector.broadcast %135 : vector<1x256xf32> to vector<2x256xf32>
    %137 = arith.mulf %136, %122 : vector<2x256xf32>
    %138 = arith.addf %118, %137 : vector<2x256xf32>
    %c18_i32 = arith.constant 18 : i32
    %139 = tpu.dynamic_rotate %9 by %c18_i32 dim 1 : vector<2x256xf32>, i32 -> vector<2x256xf32>
    %140 = vector.extract_strided_slice %34 {offsets = [5, 0], sizes = [1, 256], strides = [1, 1]} : vector<25x256xf32> to vector<1x256xf32>
    %141 = vector.broadcast %140 : vector<1x256xf32> to vector<2x256xf32>
    %142 = arith.mulf %139, %141 : vector<2x256xf32>
    %143 = vector.extract_strided_slice %33 {offsets = [20, 0], sizes = [1, 256], strides = [1, 1]} : vector<100x256xf32> to vector<1x256xf32>
    %144 = vector.broadcast %143 : vector<1x256xf32> to vector<2x256xf32>
    %145 = arith.mulf %144, %142 : vector<2x256xf32>
    %146 = arith.addf %126, %145 : vector<2x256xf32>
    %147 = vector.extract_strided_slice %33 {offsets = [21, 0], sizes = [1, 256], strides = [1, 1]} : vector<100x256xf32> to vector<1x256xf32>
    %148 = vector.broadcast %147 : vector<1x256xf32> to vector<2x256xf32>
    %149 = arith.mulf %148, %142 : vector<2x256xf32>
    %150 = arith.addf %130, %149 : vector<2x256xf32>
    %151 = vector.extract_strided_slice %33 {offsets = [22, 0], sizes = [1, 256], strides = [1, 1]} : vector<100x256xf32> to vector<1x256xf32>
    %152 = vector.broadcast %151 : vector<1x256xf32> to vector<2x256xf32>
    %153 = arith.mulf %152, %142 : vector<2x256xf32>
    %154 = arith.addf %134, %153 : vector<2x256xf32>
    %155 = vector.extract_strided_slice %33 {offsets = [23, 0], sizes = [1, 256], strides = [1, 1]} : vector<100x256xf32> to vector<1x256xf32>
    %156 = vector.broadcast %155 : vector<1x256xf32> to vector<2x256xf32>
    %157 = arith.mulf %156, %142 : vector<2x256xf32>
    %158 = arith.addf %138, %157 : vector<2x256xf32>
    %c17_i32 = arith.constant 17 : i32
    %159 = tpu.dynamic_rotate %9 by %c17_i32 dim 1 : vector<2x256xf32>, i32 -> vector<2x256xf32>
    %160 = vector.extract_strided_slice %34 {offsets = [6, 0], sizes = [1, 256], strides = [1, 1]} : vector<25x256xf32> to vector<1x256xf32>
    %161 = vector.broadcast %160 : vector<1x256xf32> to vector<2x256xf32>
    %162 = arith.mulf %159, %161 : vector<2x256xf32>
    %163 = vector.extract_strided_slice %33 {offsets = [24, 0], sizes = [1, 256], strides = [1, 1]} : vector<100x256xf32> to vector<1x256xf32>
    %164 = vector.broadcast %163 : vector<1x256xf32> to vector<2x256xf32>
    %165 = arith.mulf %164, %162 : vector<2x256xf32>
    %166 = arith.addf %146, %165 : vector<2x256xf32>
    %167 = vector.extract_strided_slice %33 {offsets = [25, 0], sizes = [1, 256], strides = [1, 1]} : vector<100x256xf32> to vector<1x256xf32>
    %168 = vector.broadcast %167 : vector<1x256xf32> to vector<2x256xf32>
    %169 = arith.mulf %168, %162 : vector<2x256xf32>
    %170 = arith.addf %150, %169 : vector<2x256xf32>
    %171 = vector.extract_strided_slice %33 {offsets = [26, 0], sizes = [1, 256], strides = [1, 1]} : vector<100x256xf32> to vector<1x256xf32>
    %172 = vector.broadcast %171 : vector<1x256xf32> to vector<2x256xf32>
    %173 = arith.mulf %172, %162 : vector<2x256xf32>
    %174 = arith.addf %154, %173 : vector<2x256xf32>
    %175 = vector.extract_strided_slice %33 {offsets = [27, 0], sizes = [1, 256], strides = [1, 1]} : vector<100x256xf32> to vector<1x256xf32>
    %176 = vector.broadcast %175 : vector<1x256xf32> to vector<2x256xf32>
    %177 = arith.mulf %176, %162 : vector<2x256xf32>
    %178 = arith.addf %158, %177 : vector<2x256xf32>
    %c16_i32 = arith.constant 16 : i32
    %179 = tpu.dynamic_rotate %9 by %c16_i32 dim 1 : vector<2x256xf32>, i32 -> vector<2x256xf32>
    %180 = vector.extract_strided_slice %34 {offsets = [7, 0], sizes = [1, 256], strides = [1, 1]} : vector<25x256xf32> to vector<1x256xf32>
    %181 = vector.broadcast %180 : vector<1x256xf32> to vector<2x256xf32>
    %182 = arith.mulf %179, %181 : vector<2x256xf32>
    %183 = vector.extract_strided_slice %33 {offsets = [28, 0], sizes = [1, 256], strides = [1, 1]} : vector<100x256xf32> to vector<1x256xf32>
    %184 = vector.broadcast %183 : vector<1x256xf32> to vector<2x256xf32>
    %185 = arith.mulf %184, %182 : vector<2x256xf32>
    %186 = arith.addf %166, %185 : vector<2x256xf32>
    %187 = vector.extract_strided_slice %33 {offsets = [29, 0], sizes = [1, 256], strides = [1, 1]} : vector<100x256xf32> to vector<1x256xf32>
    %188 = vector.broadcast %187 : vector<1x256xf32> to vector<2x256xf32>
    %189 = arith.mulf %188, %182 : vector<2x256xf32>
    %190 = arith.addf %170, %189 : vector<2x256xf32>
    %191 = vector.extract_strided_slice %33 {offsets = [30, 0], sizes = [1, 256], strides = [1, 1]} : vector<100x256xf32> to vector<1x256xf32>
    %192 = vector.broadcast %191 : vector<1x256xf32> to vector<2x256xf32>
    %193 = arith.mulf %192, %182 : vector<2x256xf32>
    %194 = arith.addf %174, %193 : vector<2x256xf32>
    %195 = vector.extract_strided_slice %33 {offsets = [31, 0], sizes = [1, 256], strides = [1, 1]} : vector<100x256xf32> to vector<1x256xf32>
    %196 = vector.broadcast %195 : vector<1x256xf32> to vector<2x256xf32>
    %197 = arith.mulf %196, %182 : vector<2x256xf32>
    %198 = arith.addf %178, %197 : vector<2x256xf32>
    %c15_i32 = arith.constant 15 : i32
    %199 = tpu.dynamic_rotate %9 by %c15_i32 dim 1 : vector<2x256xf32>, i32 -> vector<2x256xf32>
    %200 = vector.extract_strided_slice %34 {offsets = [8, 0], sizes = [1, 256], strides = [1, 1]} : vector<25x256xf32> to vector<1x256xf32>
    %201 = vector.broadcast %200 : vector<1x256xf32> to vector<2x256xf32>
    %202 = arith.mulf %199, %201 : vector<2x256xf32>
    %203 = vector.extract_strided_slice %33 {offsets = [32, 0], sizes = [1, 256], strides = [1, 1]} : vector<100x256xf32> to vector<1x256xf32>
    %204 = vector.broadcast %203 : vector<1x256xf32> to vector<2x256xf32>
    %205 = arith.mulf %204, %202 : vector<2x256xf32>
    %206 = arith.addf %186, %205 : vector<2x256xf32>
    %207 = vector.extract_strided_slice %33 {offsets = [33, 0], sizes = [1, 256], strides = [1, 1]} : vector<100x256xf32> to vector<1x256xf32>
    %208 = vector.broadcast %207 : vector<1x256xf32> to vector<2x256xf32>
    %209 = arith.mulf %208, %202 : vector<2x256xf32>
    %210 = arith.addf %190, %209 : vector<2x256xf32>
    %211 = vector.extract_strided_slice %33 {offsets = [34, 0], sizes = [1, 256], strides = [1, 1]} : vector<100x256xf32> to vector<1x256xf32>
    %212 = vector.broadcast %211 : vector<1x256xf32> to vector<2x256xf32>
    %213 = arith.mulf %212, %202 : vector<2x256xf32>
    %214 = arith.addf %194, %213 : vector<2x256xf32>
    %215 = vector.extract_strided_slice %33 {offsets = [35, 0], sizes = [1, 256], strides = [1, 1]} : vector<100x256xf32> to vector<1x256xf32>
    %216 = vector.broadcast %215 : vector<1x256xf32> to vector<2x256xf32>
    %217 = arith.mulf %216, %202 : vector<2x256xf32>
    %218 = arith.addf %198, %217 : vector<2x256xf32>
    %c14_i32 = arith.constant 14 : i32
    %219 = tpu.dynamic_rotate %9 by %c14_i32 dim 1 : vector<2x256xf32>, i32 -> vector<2x256xf32>
    %220 = vector.extract_strided_slice %34 {offsets = [9, 0], sizes = [1, 256], strides = [1, 1]} : vector<25x256xf32> to vector<1x256xf32>
    %221 = vector.broadcast %220 : vector<1x256xf32> to vector<2x256xf32>
    %222 = arith.mulf %219, %221 : vector<2x256xf32>
    %223 = vector.extract_strided_slice %33 {offsets = [36, 0], sizes = [1, 256], strides = [1, 1]} : vector<100x256xf32> to vector<1x256xf32>
    %224 = vector.broadcast %223 : vector<1x256xf32> to vector<2x256xf32>
    %225 = arith.mulf %224, %222 : vector<2x256xf32>
    %226 = arith.addf %206, %225 : vector<2x256xf32>
    %227 = vector.extract_strided_slice %33 {offsets = [37, 0], sizes = [1, 256], strides = [1, 1]} : vector<100x256xf32> to vector<1x256xf32>
    %228 = vector.broadcast %227 : vector<1x256xf32> to vector<2x256xf32>
    %229 = arith.mulf %228, %222 : vector<2x256xf32>
    %230 = arith.addf %210, %229 : vector<2x256xf32>
    %231 = vector.extract_strided_slice %33 {offsets = [38, 0], sizes = [1, 256], strides = [1, 1]} : vector<100x256xf32> to vector<1x256xf32>
    %232 = vector.broadcast %231 : vector<1x256xf32> to vector<2x256xf32>
    %233 = arith.mulf %232, %222 : vector<2x256xf32>
    %234 = arith.addf %214, %233 : vector<2x256xf32>
    %235 = vector.extract_strided_slice %33 {offsets = [39, 0], sizes = [1, 256], strides = [1, 1]} : vector<100x256xf32> to vector<1x256xf32>
    %236 = vector.broadcast %235 : vector<1x256xf32> to vector<2x256xf32>
    %237 = arith.mulf %236, %222 : vector<2x256xf32>
    %238 = arith.addf %218, %237 : vector<2x256xf32>
    %c2_i32 = arith.constant 2 : i32
    %239 = tpu.dynamic_rotate %9 by %c2_i32 dim 1 : vector<2x256xf32>, i32 -> vector<2x256xf32>
    %240 = vector.extract_strided_slice %34 {offsets = [10, 0], sizes = [1, 256], strides = [1, 1]} : vector<25x256xf32> to vector<1x256xf32>
    %241 = vector.broadcast %240 : vector<1x256xf32> to vector<2x256xf32>
    %242 = arith.mulf %239, %241 : vector<2x256xf32>
    %243 = vector.extract_strided_slice %33 {offsets = [40, 0], sizes = [1, 256], strides = [1, 1]} : vector<100x256xf32> to vector<1x256xf32>
    %244 = vector.broadcast %243 : vector<1x256xf32> to vector<2x256xf32>
    %245 = arith.mulf %244, %242 : vector<2x256xf32>
    %246 = arith.addf %226, %245 : vector<2x256xf32>
    %247 = vector.extract_strided_slice %33 {offsets = [41, 0], sizes = [1, 256], strides = [1, 1]} : vector<100x256xf32> to vector<1x256xf32>
    %248 = vector.broadcast %247 : vector<1x256xf32> to vector<2x256xf32>
    %249 = arith.mulf %248, %242 : vector<2x256xf32>
    %250 = arith.addf %230, %249 : vector<2x256xf32>
    %251 = vector.extract_strided_slice %33 {offsets = [42, 0], sizes = [1, 256], strides = [1, 1]} : vector<100x256xf32> to vector<1x256xf32>
    %252 = vector.broadcast %251 : vector<1x256xf32> to vector<2x256xf32>
    %253 = arith.mulf %252, %242 : vector<2x256xf32>
    %254 = arith.addf %234, %253 : vector<2x256xf32>
    %255 = vector.extract_strided_slice %33 {offsets = [43, 0], sizes = [1, 256], strides = [1, 1]} : vector<100x256xf32> to vector<1x256xf32>
    %256 = vector.broadcast %255 : vector<1x256xf32> to vector<2x256xf32>
    %257 = arith.mulf %256, %242 : vector<2x256xf32>
    %258 = arith.addf %238, %257 : vector<2x256xf32>
    %c1_i32 = arith.constant 1 : i32
    %259 = tpu.dynamic_rotate %9 by %c1_i32 dim 1 : vector<2x256xf32>, i32 -> vector<2x256xf32>
    %260 = vector.extract_strided_slice %34 {offsets = [11, 0], sizes = [1, 256], strides = [1, 1]} : vector<25x256xf32> to vector<1x256xf32>
    %261 = vector.broadcast %260 : vector<1x256xf32> to vector<2x256xf32>
    %262 = arith.mulf %259, %261 : vector<2x256xf32>
    %263 = vector.extract_strided_slice %33 {offsets = [44, 0], sizes = [1, 256], strides = [1, 1]} : vector<100x256xf32> to vector<1x256xf32>
    %264 = vector.broadcast %263 : vector<1x256xf32> to vector<2x256xf32>
    %265 = arith.mulf %264, %262 : vector<2x256xf32>
    %266 = arith.addf %246, %265 : vector<2x256xf32>
    %267 = vector.extract_strided_slice %33 {offsets = [45, 0], sizes = [1, 256], strides = [1, 1]} : vector<100x256xf32> to vector<1x256xf32>
    %268 = vector.broadcast %267 : vector<1x256xf32> to vector<2x256xf32>
    %269 = arith.mulf %268, %262 : vector<2x256xf32>
    %270 = arith.addf %250, %269 : vector<2x256xf32>
    %271 = vector.extract_strided_slice %33 {offsets = [46, 0], sizes = [1, 256], strides = [1, 1]} : vector<100x256xf32> to vector<1x256xf32>
    %272 = vector.broadcast %271 : vector<1x256xf32> to vector<2x256xf32>
    %273 = arith.mulf %272, %262 : vector<2x256xf32>
    %274 = arith.addf %254, %273 : vector<2x256xf32>
    %275 = vector.extract_strided_slice %33 {offsets = [47, 0], sizes = [1, 256], strides = [1, 1]} : vector<100x256xf32> to vector<1x256xf32>
    %276 = vector.broadcast %275 : vector<1x256xf32> to vector<2x256xf32>
    %277 = arith.mulf %276, %262 : vector<2x256xf32>
    %278 = arith.addf %258, %277 : vector<2x256xf32>
    %279 = vector.extract_strided_slice %34 {offsets = [12, 0], sizes = [1, 256], strides = [1, 1]} : vector<25x256xf32> to vector<1x256xf32>
    %280 = vector.broadcast %279 : vector<1x256xf32> to vector<2x256xf32>
    %281 = arith.mulf %9, %280 : vector<2x256xf32>
    %282 = vector.extract_strided_slice %33 {offsets = [48, 0], sizes = [1, 256], strides = [1, 1]} : vector<100x256xf32> to vector<1x256xf32>
    %283 = vector.broadcast %282 : vector<1x256xf32> to vector<2x256xf32>
    %284 = arith.mulf %283, %281 : vector<2x256xf32>
    %285 = arith.addf %266, %284 : vector<2x256xf32>
    %286 = vector.extract_strided_slice %33 {offsets = [49, 0], sizes = [1, 256], strides = [1, 1]} : vector<100x256xf32> to vector<1x256xf32>
    %287 = vector.broadcast %286 : vector<1x256xf32> to vector<2x256xf32>
    %288 = arith.mulf %287, %281 : vector<2x256xf32>
    %289 = arith.addf %270, %288 : vector<2x256xf32>
    %290 = vector.extract_strided_slice %33 {offsets = [50, 0], sizes = [1, 256], strides = [1, 1]} : vector<100x256xf32> to vector<1x256xf32>
    %291 = vector.broadcast %290 : vector<1x256xf32> to vector<2x256xf32>
    %292 = arith.mulf %291, %281 : vector<2x256xf32>
    %293 = arith.addf %274, %292 : vector<2x256xf32>
    %294 = vector.extract_strided_slice %33 {offsets = [51, 0], sizes = [1, 256], strides = [1, 1]} : vector<100x256xf32> to vector<1x256xf32>
    %295 = vector.broadcast %294 : vector<1x256xf32> to vector<2x256xf32>
    %296 = arith.mulf %295, %281 : vector<2x256xf32>
    %297 = arith.addf %278, %296 : vector<2x256xf32>
    %c255_i32 = arith.constant 255 : i32
    %298 = tpu.dynamic_rotate %9 by %c255_i32 dim 1 : vector<2x256xf32>, i32 -> vector<2x256xf32>
    %299 = vector.extract_strided_slice %34 {offsets = [13, 0], sizes = [1, 256], strides = [1, 1]} : vector<25x256xf32> to vector<1x256xf32>
    %300 = vector.broadcast %299 : vector<1x256xf32> to vector<2x256xf32>
    %301 = arith.mulf %298, %300 : vector<2x256xf32>
    %302 = vector.extract_strided_slice %33 {offsets = [52, 0], sizes = [1, 256], strides = [1, 1]} : vector<100x256xf32> to vector<1x256xf32>
    %303 = vector.broadcast %302 : vector<1x256xf32> to vector<2x256xf32>
    %304 = arith.mulf %303, %301 : vector<2x256xf32>
    %305 = arith.addf %285, %304 : vector<2x256xf32>
    %306 = vector.extract_strided_slice %33 {offsets = [53, 0], sizes = [1, 256], strides = [1, 1]} : vector<100x256xf32> to vector<1x256xf32>
    %307 = vector.broadcast %306 : vector<1x256xf32> to vector<2x256xf32>
    %308 = arith.mulf %307, %301 : vector<2x256xf32>
    %309 = arith.addf %289, %308 : vector<2x256xf32>
    %310 = vector.extract_strided_slice %33 {offsets = [54, 0], sizes = [1, 256], strides = [1, 1]} : vector<100x256xf32> to vector<1x256xf32>
    %311 = vector.broadcast %310 : vector<1x256xf32> to vector<2x256xf32>
    %312 = arith.mulf %311, %301 : vector<2x256xf32>
    %313 = arith.addf %293, %312 : vector<2x256xf32>
    %314 = vector.extract_strided_slice %33 {offsets = [55, 0], sizes = [1, 256], strides = [1, 1]} : vector<100x256xf32> to vector<1x256xf32>
    %315 = vector.broadcast %314 : vector<1x256xf32> to vector<2x256xf32>
    %316 = arith.mulf %315, %301 : vector<2x256xf32>
    %317 = arith.addf %297, %316 : vector<2x256xf32>
    %c254_i32 = arith.constant 254 : i32
    %318 = tpu.dynamic_rotate %9 by %c254_i32 dim 1 : vector<2x256xf32>, i32 -> vector<2x256xf32>
    %319 = vector.extract_strided_slice %34 {offsets = [14, 0], sizes = [1, 256], strides = [1, 1]} : vector<25x256xf32> to vector<1x256xf32>
    %320 = vector.broadcast %319 : vector<1x256xf32> to vector<2x256xf32>
    %321 = arith.mulf %318, %320 : vector<2x256xf32>
    %322 = vector.extract_strided_slice %33 {offsets = [56, 0], sizes = [1, 256], strides = [1, 1]} : vector<100x256xf32> to vector<1x256xf32>
    %323 = vector.broadcast %322 : vector<1x256xf32> to vector<2x256xf32>
    %324 = arith.mulf %323, %321 : vector<2x256xf32>
    %325 = arith.addf %305, %324 : vector<2x256xf32>
    %326 = vector.extract_strided_slice %33 {offsets = [57, 0], sizes = [1, 256], strides = [1, 1]} : vector<100x256xf32> to vector<1x256xf32>
    %327 = vector.broadcast %326 : vector<1x256xf32> to vector<2x256xf32>
    %328 = arith.mulf %327, %321 : vector<2x256xf32>
    %329 = arith.addf %309, %328 : vector<2x256xf32>
    %330 = vector.extract_strided_slice %33 {offsets = [58, 0], sizes = [1, 256], strides = [1, 1]} : vector<100x256xf32> to vector<1x256xf32>
    %331 = vector.broadcast %330 : vector<1x256xf32> to vector<2x256xf32>
    %332 = arith.mulf %331, %321 : vector<2x256xf32>
    %333 = arith.addf %313, %332 : vector<2x256xf32>
    %334 = vector.extract_strided_slice %33 {offsets = [59, 0], sizes = [1, 256], strides = [1, 1]} : vector<100x256xf32> to vector<1x256xf32>
    %335 = vector.broadcast %334 : vector<1x256xf32> to vector<2x256xf32>
    %336 = arith.mulf %335, %321 : vector<2x256xf32>
    %337 = arith.addf %317, %336 : vector<2x256xf32>
    %c242_i32 = arith.constant 242 : i32
    %338 = tpu.dynamic_rotate %9 by %c242_i32 dim 1 : vector<2x256xf32>, i32 -> vector<2x256xf32>
    %339 = vector.extract_strided_slice %34 {offsets = [15, 0], sizes = [1, 256], strides = [1, 1]} : vector<25x256xf32> to vector<1x256xf32>
    %340 = vector.broadcast %339 : vector<1x256xf32> to vector<2x256xf32>
    %341 = arith.mulf %338, %340 : vector<2x256xf32>
    %342 = vector.extract_strided_slice %33 {offsets = [60, 0], sizes = [1, 256], strides = [1, 1]} : vector<100x256xf32> to vector<1x256xf32>
    %343 = vector.broadcast %342 : vector<1x256xf32> to vector<2x256xf32>
    %344 = arith.mulf %343, %341 : vector<2x256xf32>
    %345 = arith.addf %325, %344 : vector<2x256xf32>
    %346 = vector.extract_strided_slice %33 {offsets = [61, 0], sizes = [1, 256], strides = [1, 1]} : vector<100x256xf32> to vector<1x256xf32>
    %347 = vector.broadcast %346 : vector<1x256xf32> to vector<2x256xf32>
    %348 = arith.mulf %347, %341 : vector<2x256xf32>
    %349 = arith.addf %329, %348 : vector<2x256xf32>
    %350 = vector.extract_strided_slice %33 {offsets = [62, 0], sizes = [1, 256], strides = [1, 1]} : vector<100x256xf32> to vector<1x256xf32>
    %351 = vector.broadcast %350 : vector<1x256xf32> to vector<2x256xf32>
    %352 = arith.mulf %351, %341 : vector<2x256xf32>
    %353 = arith.addf %333, %352 : vector<2x256xf32>
    %354 = vector.extract_strided_slice %33 {offsets = [63, 0], sizes = [1, 256], strides = [1, 1]} : vector<100x256xf32> to vector<1x256xf32>
    %355 = vector.broadcast %354 : vector<1x256xf32> to vector<2x256xf32>
    %356 = arith.mulf %355, %341 : vector<2x256xf32>
    %357 = arith.addf %337, %356 : vector<2x256xf32>
    %c241_i32 = arith.constant 241 : i32
    %358 = tpu.dynamic_rotate %9 by %c241_i32 dim 1 : vector<2x256xf32>, i32 -> vector<2x256xf32>
    %359 = vector.extract_strided_slice %34 {offsets = [16, 0], sizes = [1, 256], strides = [1, 1]} : vector<25x256xf32> to vector<1x256xf32>
    %360 = vector.broadcast %359 : vector<1x256xf32> to vector<2x256xf32>
    %361 = arith.mulf %358, %360 : vector<2x256xf32>
    %362 = vector.extract_strided_slice %33 {offsets = [64, 0], sizes = [1, 256], strides = [1, 1]} : vector<100x256xf32> to vector<1x256xf32>
    %363 = vector.broadcast %362 : vector<1x256xf32> to vector<2x256xf32>
    %364 = arith.mulf %363, %361 : vector<2x256xf32>
    %365 = arith.addf %345, %364 : vector<2x256xf32>
    %366 = vector.extract_strided_slice %33 {offsets = [65, 0], sizes = [1, 256], strides = [1, 1]} : vector<100x256xf32> to vector<1x256xf32>
    %367 = vector.broadcast %366 : vector<1x256xf32> to vector<2x256xf32>
    %368 = arith.mulf %367, %361 : vector<2x256xf32>
    %369 = arith.addf %349, %368 : vector<2x256xf32>
    %370 = vector.extract_strided_slice %33 {offsets = [66, 0], sizes = [1, 256], strides = [1, 1]} : vector<100x256xf32> to vector<1x256xf32>
    %371 = vector.broadcast %370 : vector<1x256xf32> to vector<2x256xf32>
    %372 = arith.mulf %371, %361 : vector<2x256xf32>
    %373 = arith.addf %353, %372 : vector<2x256xf32>
    %374 = vector.extract_strided_slice %33 {offsets = [67, 0], sizes = [1, 256], strides = [1, 1]} : vector<100x256xf32> to vector<1x256xf32>
    %375 = vector.broadcast %374 : vector<1x256xf32> to vector<2x256xf32>
    %376 = arith.mulf %375, %361 : vector<2x256xf32>
    %377 = arith.addf %357, %376 : vector<2x256xf32>
    %c240_i32 = arith.constant 240 : i32
    %378 = tpu.dynamic_rotate %9 by %c240_i32 dim 1 : vector<2x256xf32>, i32 -> vector<2x256xf32>
    %379 = vector.extract_strided_slice %34 {offsets = [17, 0], sizes = [1, 256], strides = [1, 1]} : vector<25x256xf32> to vector<1x256xf32>
    %380 = vector.broadcast %379 : vector<1x256xf32> to vector<2x256xf32>
    %381 = arith.mulf %378, %380 : vector<2x256xf32>
    %382 = vector.extract_strided_slice %33 {offsets = [68, 0], sizes = [1, 256], strides = [1, 1]} : vector<100x256xf32> to vector<1x256xf32>
    %383 = vector.broadcast %382 : vector<1x256xf32> to vector<2x256xf32>
    %384 = arith.mulf %383, %381 : vector<2x256xf32>
    %385 = arith.addf %365, %384 : vector<2x256xf32>
    %386 = vector.extract_strided_slice %33 {offsets = [69, 0], sizes = [1, 256], strides = [1, 1]} : vector<100x256xf32> to vector<1x256xf32>
    %387 = vector.broadcast %386 : vector<1x256xf32> to vector<2x256xf32>
    %388 = arith.mulf %387, %381 : vector<2x256xf32>
    %389 = arith.addf %369, %388 : vector<2x256xf32>
    %390 = vector.extract_strided_slice %33 {offsets = [70, 0], sizes = [1, 256], strides = [1, 1]} : vector<100x256xf32> to vector<1x256xf32>
    %391 = vector.broadcast %390 : vector<1x256xf32> to vector<2x256xf32>
    %392 = arith.mulf %391, %381 : vector<2x256xf32>
    %393 = arith.addf %373, %392 : vector<2x256xf32>
    %394 = vector.extract_strided_slice %33 {offsets = [71, 0], sizes = [1, 256], strides = [1, 1]} : vector<100x256xf32> to vector<1x256xf32>
    %395 = vector.broadcast %394 : vector<1x256xf32> to vector<2x256xf32>
    %396 = arith.mulf %395, %381 : vector<2x256xf32>
    %397 = arith.addf %377, %396 : vector<2x256xf32>
    %c239_i32 = arith.constant 239 : i32
    %398 = tpu.dynamic_rotate %9 by %c239_i32 dim 1 : vector<2x256xf32>, i32 -> vector<2x256xf32>
    %399 = vector.extract_strided_slice %34 {offsets = [18, 0], sizes = [1, 256], strides = [1, 1]} : vector<25x256xf32> to vector<1x256xf32>
    %400 = vector.broadcast %399 : vector<1x256xf32> to vector<2x256xf32>
    %401 = arith.mulf %398, %400 : vector<2x256xf32>
    %402 = vector.extract_strided_slice %33 {offsets = [72, 0], sizes = [1, 256], strides = [1, 1]} : vector<100x256xf32> to vector<1x256xf32>
    %403 = vector.broadcast %402 : vector<1x256xf32> to vector<2x256xf32>
    %404 = arith.mulf %403, %401 : vector<2x256xf32>
    %405 = arith.addf %385, %404 : vector<2x256xf32>
    %406 = vector.extract_strided_slice %33 {offsets = [73, 0], sizes = [1, 256], strides = [1, 1]} : vector<100x256xf32> to vector<1x256xf32>
    %407 = vector.broadcast %406 : vector<1x256xf32> to vector<2x256xf32>
    %408 = arith.mulf %407, %401 : vector<2x256xf32>
    %409 = arith.addf %389, %408 : vector<2x256xf32>
    %410 = vector.extract_strided_slice %33 {offsets = [74, 0], sizes = [1, 256], strides = [1, 1]} : vector<100x256xf32> to vector<1x256xf32>
    %411 = vector.broadcast %410 : vector<1x256xf32> to vector<2x256xf32>
    %412 = arith.mulf %411, %401 : vector<2x256xf32>
    %413 = arith.addf %393, %412 : vector<2x256xf32>
    %414 = vector.extract_strided_slice %33 {offsets = [75, 0], sizes = [1, 256], strides = [1, 1]} : vector<100x256xf32> to vector<1x256xf32>
    %415 = vector.broadcast %414 : vector<1x256xf32> to vector<2x256xf32>
    %416 = arith.mulf %415, %401 : vector<2x256xf32>
    %417 = arith.addf %397, %416 : vector<2x256xf32>
    %c238_i32 = arith.constant 238 : i32
    %418 = tpu.dynamic_rotate %9 by %c238_i32 dim 1 : vector<2x256xf32>, i32 -> vector<2x256xf32>
    %419 = vector.extract_strided_slice %34 {offsets = [19, 0], sizes = [1, 256], strides = [1, 1]} : vector<25x256xf32> to vector<1x256xf32>
    %420 = vector.broadcast %419 : vector<1x256xf32> to vector<2x256xf32>
    %421 = arith.mulf %418, %420 : vector<2x256xf32>
    %422 = vector.extract_strided_slice %33 {offsets = [76, 0], sizes = [1, 256], strides = [1, 1]} : vector<100x256xf32> to vector<1x256xf32>
    %423 = vector.broadcast %422 : vector<1x256xf32> to vector<2x256xf32>
    %424 = arith.mulf %423, %421 : vector<2x256xf32>
    %425 = arith.addf %405, %424 : vector<2x256xf32>
    %426 = vector.extract_strided_slice %33 {offsets = [77, 0], sizes = [1, 256], strides = [1, 1]} : vector<100x256xf32> to vector<1x256xf32>
    %427 = vector.broadcast %426 : vector<1x256xf32> to vector<2x256xf32>
    %428 = arith.mulf %427, %421 : vector<2x256xf32>
    %429 = arith.addf %409, %428 : vector<2x256xf32>
    %430 = vector.extract_strided_slice %33 {offsets = [78, 0], sizes = [1, 256], strides = [1, 1]} : vector<100x256xf32> to vector<1x256xf32>
    %431 = vector.broadcast %430 : vector<1x256xf32> to vector<2x256xf32>
    %432 = arith.mulf %431, %421 : vector<2x256xf32>
    %433 = arith.addf %413, %432 : vector<2x256xf32>
    %434 = vector.extract_strided_slice %33 {offsets = [79, 0], sizes = [1, 256], strides = [1, 1]} : vector<100x256xf32> to vector<1x256xf32>
    %435 = vector.broadcast %434 : vector<1x256xf32> to vector<2x256xf32>
    %436 = arith.mulf %435, %421 : vector<2x256xf32>
    %437 = arith.addf %417, %436 : vector<2x256xf32>
    %c226_i32 = arith.constant 226 : i32
    %438 = tpu.dynamic_rotate %9 by %c226_i32 dim 1 : vector<2x256xf32>, i32 -> vector<2x256xf32>
    %439 = vector.extract_strided_slice %34 {offsets = [20, 0], sizes = [1, 256], strides = [1, 1]} : vector<25x256xf32> to vector<1x256xf32>
    %440 = vector.broadcast %439 : vector<1x256xf32> to vector<2x256xf32>
    %441 = arith.mulf %438, %440 : vector<2x256xf32>
    %442 = vector.extract_strided_slice %33 {offsets = [80, 0], sizes = [1, 256], strides = [1, 1]} : vector<100x256xf32> to vector<1x256xf32>
    %443 = vector.broadcast %442 : vector<1x256xf32> to vector<2x256xf32>
    %444 = arith.mulf %443, %441 : vector<2x256xf32>
    %445 = arith.addf %425, %444 : vector<2x256xf32>
    %446 = vector.extract_strided_slice %33 {offsets = [81, 0], sizes = [1, 256], strides = [1, 1]} : vector<100x256xf32> to vector<1x256xf32>
    %447 = vector.broadcast %446 : vector<1x256xf32> to vector<2x256xf32>
    %448 = arith.mulf %447, %441 : vector<2x256xf32>
    %449 = arith.addf %429, %448 : vector<2x256xf32>
    %450 = vector.extract_strided_slice %33 {offsets = [82, 0], sizes = [1, 256], strides = [1, 1]} : vector<100x256xf32> to vector<1x256xf32>
    %451 = vector.broadcast %450 : vector<1x256xf32> to vector<2x256xf32>
    %452 = arith.mulf %451, %441 : vector<2x256xf32>
    %453 = arith.addf %433, %452 : vector<2x256xf32>
    %454 = vector.extract_strided_slice %33 {offsets = [83, 0], sizes = [1, 256], strides = [1, 1]} : vector<100x256xf32> to vector<1x256xf32>
    %455 = vector.broadcast %454 : vector<1x256xf32> to vector<2x256xf32>
    %456 = arith.mulf %455, %441 : vector<2x256xf32>
    %457 = arith.addf %437, %456 : vector<2x256xf32>
    %c225_i32 = arith.constant 225 : i32
    %458 = tpu.dynamic_rotate %9 by %c225_i32 dim 1 : vector<2x256xf32>, i32 -> vector<2x256xf32>
    %459 = vector.extract_strided_slice %34 {offsets = [21, 0], sizes = [1, 256], strides = [1, 1]} : vector<25x256xf32> to vector<1x256xf32>
    %460 = vector.broadcast %459 : vector<1x256xf32> to vector<2x256xf32>
    %461 = arith.mulf %458, %460 : vector<2x256xf32>
    %462 = vector.extract_strided_slice %33 {offsets = [84, 0], sizes = [1, 256], strides = [1, 1]} : vector<100x256xf32> to vector<1x256xf32>
    %463 = vector.broadcast %462 : vector<1x256xf32> to vector<2x256xf32>
    %464 = arith.mulf %463, %461 : vector<2x256xf32>
    %465 = arith.addf %445, %464 : vector<2x256xf32>
    %466 = vector.extract_strided_slice %33 {offsets = [85, 0], sizes = [1, 256], strides = [1, 1]} : vector<100x256xf32> to vector<1x256xf32>
    %467 = vector.broadcast %466 : vector<1x256xf32> to vector<2x256xf32>
    %468 = arith.mulf %467, %461 : vector<2x256xf32>
    %469 = arith.addf %449, %468 : vector<2x256xf32>
    %470 = vector.extract_strided_slice %33 {offsets = [86, 0], sizes = [1, 256], strides = [1, 1]} : vector<100x256xf32> to vector<1x256xf32>
    %471 = vector.broadcast %470 : vector<1x256xf32> to vector<2x256xf32>
    %472 = arith.mulf %471, %461 : vector<2x256xf32>
    %473 = arith.addf %453, %472 : vector<2x256xf32>
    %474 = vector.extract_strided_slice %33 {offsets = [87, 0], sizes = [1, 256], strides = [1, 1]} : vector<100x256xf32> to vector<1x256xf32>
    %475 = vector.broadcast %474 : vector<1x256xf32> to vector<2x256xf32>
    %476 = arith.mulf %475, %461 : vector<2x256xf32>
    %477 = arith.addf %457, %476 : vector<2x256xf32>
    %c224_i32 = arith.constant 224 : i32
    %478 = tpu.dynamic_rotate %9 by %c224_i32 dim 1 : vector<2x256xf32>, i32 -> vector<2x256xf32>
    %479 = vector.extract_strided_slice %34 {offsets = [22, 0], sizes = [1, 256], strides = [1, 1]} : vector<25x256xf32> to vector<1x256xf32>
    %480 = vector.broadcast %479 : vector<1x256xf32> to vector<2x256xf32>
    %481 = arith.mulf %478, %480 : vector<2x256xf32>
    %482 = vector.extract_strided_slice %33 {offsets = [88, 0], sizes = [1, 256], strides = [1, 1]} : vector<100x256xf32> to vector<1x256xf32>
    %483 = vector.broadcast %482 : vector<1x256xf32> to vector<2x256xf32>
    %484 = arith.mulf %483, %481 : vector<2x256xf32>
    %485 = arith.addf %465, %484 : vector<2x256xf32>
    %486 = vector.extract_strided_slice %33 {offsets = [89, 0], sizes = [1, 256], strides = [1, 1]} : vector<100x256xf32> to vector<1x256xf32>
    %487 = vector.broadcast %486 : vector<1x256xf32> to vector<2x256xf32>
    %488 = arith.mulf %487, %481 : vector<2x256xf32>
    %489 = arith.addf %469, %488 : vector<2x256xf32>
    %490 = vector.extract_strided_slice %33 {offsets = [90, 0], sizes = [1, 256], strides = [1, 1]} : vector<100x256xf32> to vector<1x256xf32>
    %491 = vector.broadcast %490 : vector<1x256xf32> to vector<2x256xf32>
    %492 = arith.mulf %491, %481 : vector<2x256xf32>
    %493 = arith.addf %473, %492 : vector<2x256xf32>
    %494 = vector.extract_strided_slice %33 {offsets = [91, 0], sizes = [1, 256], strides = [1, 1]} : vector<100x256xf32> to vector<1x256xf32>
    %495 = vector.broadcast %494 : vector<1x256xf32> to vector<2x256xf32>
    %496 = arith.mulf %495, %481 : vector<2x256xf32>
    %497 = arith.addf %477, %496 : vector<2x256xf32>
    %c223_i32 = arith.constant 223 : i32
    %498 = tpu.dynamic_rotate %9 by %c223_i32 dim 1 : vector<2x256xf32>, i32 -> vector<2x256xf32>
    %499 = vector.extract_strided_slice %34 {offsets = [23, 0], sizes = [1, 256], strides = [1, 1]} : vector<25x256xf32> to vector<1x256xf32>
    %500 = vector.broadcast %499 : vector<1x256xf32> to vector<2x256xf32>
    %501 = arith.mulf %498, %500 : vector<2x256xf32>
    %502 = vector.extract_strided_slice %33 {offsets = [92, 0], sizes = [1, 256], strides = [1, 1]} : vector<100x256xf32> to vector<1x256xf32>
    %503 = vector.broadcast %502 : vector<1x256xf32> to vector<2x256xf32>
    %504 = arith.mulf %503, %501 : vector<2x256xf32>
    %505 = arith.addf %485, %504 : vector<2x256xf32>
    %506 = vector.extract_strided_slice %33 {offsets = [93, 0], sizes = [1, 256], strides = [1, 1]} : vector<100x256xf32> to vector<1x256xf32>
    %507 = vector.broadcast %506 : vector<1x256xf32> to vector<2x256xf32>
    %508 = arith.mulf %507, %501 : vector<2x256xf32>
    %509 = arith.addf %489, %508 : vector<2x256xf32>
    %510 = vector.extract_strided_slice %33 {offsets = [94, 0], sizes = [1, 256], strides = [1, 1]} : vector<100x256xf32> to vector<1x256xf32>
    %511 = vector.broadcast %510 : vector<1x256xf32> to vector<2x256xf32>
    %512 = arith.mulf %511, %501 : vector<2x256xf32>
    %513 = arith.addf %493, %512 : vector<2x256xf32>
    %514 = vector.extract_strided_slice %33 {offsets = [95, 0], sizes = [1, 256], strides = [1, 1]} : vector<100x256xf32> to vector<1x256xf32>
    %515 = vector.broadcast %514 : vector<1x256xf32> to vector<2x256xf32>
    %516 = arith.mulf %515, %501 : vector<2x256xf32>
    %517 = arith.addf %497, %516 : vector<2x256xf32>
    %c222_i32 = arith.constant 222 : i32
    %518 = tpu.dynamic_rotate %9 by %c222_i32 dim 1 : vector<2x256xf32>, i32 -> vector<2x256xf32>
    %519 = vector.extract_strided_slice %34 {offsets = [24, 0], sizes = [1, 256], strides = [1, 1]} : vector<25x256xf32> to vector<1x256xf32>
    %520 = vector.broadcast %519 : vector<1x256xf32> to vector<2x256xf32>
    %521 = arith.mulf %518, %520 : vector<2x256xf32>
    %522 = vector.extract_strided_slice %33 {offsets = [96, 0], sizes = [1, 256], strides = [1, 1]} : vector<100x256xf32> to vector<1x256xf32>
    %523 = vector.broadcast %522 : vector<1x256xf32> to vector<2x256xf32>
    %524 = arith.mulf %523, %521 : vector<2x256xf32>
    %525 = arith.addf %505, %524 : vector<2x256xf32>
    %526 = vector.extract_strided_slice %33 {offsets = [97, 0], sizes = [1, 256], strides = [1, 1]} : vector<100x256xf32> to vector<1x256xf32>
    %527 = vector.broadcast %526 : vector<1x256xf32> to vector<2x256xf32>
    %528 = arith.mulf %527, %521 : vector<2x256xf32>
    %529 = arith.addf %509, %528 : vector<2x256xf32>
    %530 = vector.extract_strided_slice %33 {offsets = [98, 0], sizes = [1, 256], strides = [1, 1]} : vector<100x256xf32> to vector<1x256xf32>
    %531 = vector.broadcast %530 : vector<1x256xf32> to vector<2x256xf32>
    %532 = arith.mulf %531, %521 : vector<2x256xf32>
    %533 = arith.addf %513, %532 : vector<2x256xf32>
    %534 = vector.extract_strided_slice %33 {offsets = [99, 0], sizes = [1, 256], strides = [1, 1]} : vector<100x256xf32> to vector<1x256xf32>
    %535 = vector.broadcast %534 : vector<1x256xf32> to vector<2x256xf32>
    %536 = arith.mulf %535, %521 : vector<2x256xf32>
    %537 = arith.addf %517, %536 : vector<2x256xf32>
    %538 = tpu.concatenate %525, %529, %533, %537 in 0 : vector<2x256xf32>, vector<2x256xf32>, vector<2x256xf32>, vector<2x256xf32> -> vector<8x256xf32>
    %539 = arith.addf %31, %538 : vector<8x256xf32>
    %c0_20 = arith.constant 0 : index
    %c0_21 = arith.constant 0 : index
    %c0_22 = arith.constant 0 : index
    %540 = vector.load %arg6[%c0_20, %c0_21, %c0_22] : memref<1x8x256xf32, #tpu.memory_space<vmem>>, vector<1x8x256xf32>
    %541 = vector.shape_cast %540 : vector<1x8x256xf32> to vector<8x256xf32>
    %542 = vector.shape_cast %539 : vector<8x256xf32> to vector<1x8x256xf32>
    tpu.vector_store %arg6[%c0_20, %c0_21, %c0_22], %542 {strides = array<i32>} : memref<1x8x256xf32, #tpu.memory_space<vmem>>, vector<1x8x256xf32>,
    return
  }
  func.func @transform_0(%arg0: i32) -> (i32, i32, i32) {
    %c0_i32 = arith.constant 0 : i32
    %c0_i32_0 = arith.constant 0 : i32
    %c0_i32_1 = arith.constant 0 : i32
    return %arg0, %c0_i32, %c0_i32_0 : i32, i32, i32
  }
  func.func @transform_1(%arg0: i32) -> (i32, i32) {
    %c0_i32 = arith.constant 0 : i32
    %c0_i32_0 = arith.constant 0 : i32
    %c0_i32_1 = arith.constant 0 : i32
    return %c0_i32, %c0_i32_0 : i32, i32
  }
  func.func @transform_2(%arg0: i32) -> (i32, i32) {
    %c0_i32 = arith.constant 0 : i32
    %c0_i32_0 = arith.constant 0 : i32
    %c0_i32_1 = arith.constant 0 : i32
    return %c0_i32, %c0_i32_0 : i32, i32
  }
  func.func @transform_3(%arg0: i32) -> (i32, i32) {
    %c0_i32 = arith.constant 0 : i32
    %c0_i32_0 = arith.constant 0 : i32
    %c0_i32_1 = arith.constant 0 : i32
    return %c0_i32, %c0_i32_0 : i32, i32
  }
  func.func @transform_4(%arg0: i32) -> (i32, i32) {
    %c0_i32 = arith.constant 0 : i32
    %c0_i32_0 = arith.constant 0 : i32
    %c0_i32_1 = arith.constant 0 : i32
    return %c0_i32, %c0_i32_0 : i32, i32
  }
  func.func @transform_5(%arg0: i32) -> (i32, i32, i32) {
    %c0_i32 = arith.constant 0 : i32
    %c0_i32_0 = arith.constant 0 : i32
    %c0_i32_1 = arith.constant 0 : i32
    return %arg0, %c0_i32, %c0_i32_0 : i32, i32, i32
  }
}

</mosaic_0001>

<llo_original>
// kernel: tpu_custom_call.1
$region0: #{tpu_custom_call.1}
  #allocation0 [shape = 'u32[]', space=smem, size = 0x4, offset = 0x4, fixed_abs, tag = 'smem constant byte address 0x4 - core index']
  #allocation1 [shape = 'u32[144,128]{1,0:T(1,128)}', space=vmem, size = 0x12000, scoped, tag = 'internal scratch']
  %s0 = inlined_call_operand.vmem [shape: bf16[2,8,256], index: 0, kind: input, shape index: {}]
  %s1 = inlined_call_operand.vmem [shape: bf16[22,8], index: 1, kind: input, shape index: {}]
  %s2 = inlined_call_operand.vmem [shape: f32[22,1], index: 2, kind: input, shape index: {}]
  %s3 = inlined_call_operand.vmem [shape: bf16[100,16], index: 3, kind: input, shape index: {}]
  %s4 = inlined_call_operand.vmem [shape: f32[25,256], index: 4, kind: input, shape index: {}]
  %s5 = inlined_call_operand.hbm [shape: f32[2,8,256], index: 5, kind: output, shape index: {}]
  %s6 = sld [smem:[#allocation0]]
  $region53: #{tpu_custom_call.1} parent=0
    _
  %s8 = ssub.s32 1, %s6
  %s9 = scalar_select 0, %s8, %s6
  $region1: #{tpu_custom_call.1} parent=0
    #allocation2 [shape = 'u8[16384]{0}', space=vmem, size = 0x4000, scoped, tag = 'output window, operand 0']
    #allocation3 [shape = 's32[2]{0}', space=sflag, size = 0x8, scoped, tag = 'scoped memory for tpu_custom_call.1']
    %10 = vsyncpa [#allocation3], 0
    %s11 = scalar_lea.sflag [#allocation3], 1
    %12 = vsyncpa %s11, 0
    loop: start=0, step=1, limit=4
    $region2: #{tpu_custom_call.1} parent=1 // loop_pre_header
      _
    $region3: #{tpu_custom_call.1} parent=1 // loop_header
      %s14 = sphi 0, %s18
      %p15 = scmp.ge.s32.totalorder %s14, 4
      %s24 = sphi 0, %s26
      %s27 = sphi 0, %s24
      %s28 = sphi 0, %s27
      %s44 = sphi 0, %s28
      %s48 = sphi 0, %s48
      %s50 = sphi 0, %s48
      %s51 = sphi 0, %s50
      %s65 = sphi 0, %s51
      %s69 = sphi 0, %s69
      %s71 = sphi 0, %s69
      %s72 = sphi 0, %s71
      %s86 = sphi 0, %s72
      %s90 = sphi 0, %s90
      %s92 = sphi 0, %s90
      %s93 = sphi 0, %s92
      %s107 = sphi 0, %s93
      %s111 = sphi 0, %s111
      %s113 = sphi 0, %s111
      %s114 = sphi 0, %s113
      %s128 = sphi 0, %s114
      %s134 = sphi 0, %s136
      %s137 = sphi 0, %s134
      %s138 = sphi 0, %s137
      %s154 = sphi 0, %s138
    $region4: #{tpu_custom_call.1} parent=1 // loop_header_branch
      %17 = sbr.rel (%p15) target = $region8
    $region5: #{tpu_custom_call.1} parent=1 // loop_body
      %s19 = ssub.s32 %s14, 1
      %s20 = ssub.s32 %s14, 2
      %s21 = sadd.s32 %s14, 1
      %s22 = ssub.s32 %s14, %s21
      %p23 = scmp.eq.s32.totalorder %s22, 0
      %s25 = sadd.s32 %s24, 1
      %s26 = scalar_select %p23, %s24, %s25
      %p29 = pneg %p23
      %p30 = scmp.eq.s32.totalorder %s14, 1
      %p31 = por %p29, %p30
      %p32 = scmp.ne.s32.totalorder %s24, %s27
      %p33 = scmp.eq.s32.totalorder %s14, 0
      %p34 = por %p32, %p33
      %p35 = scmp.ne.s32.totalorder %s24, %s27
      %p36 = scmp.eq.s32.totalorder %s19, 1
      %p37 = por %p35, %p36
      %p38 = scmp.ne.s32.totalorder %s27, %s28
      %p39 = scmp.eq.s32.totalorder %s19, 0
      %p40 = por %p38, %p39
      %p41 = scmp.ne.s32.totalorder %s27, %s28
      %p42 = scmp.eq.s32.totalorder %s20, 1
      %p43 = por %p41, %p42
      %p45 = scmp.ne.s32.totalorder %s28, %s44
      %p46 = scmp.eq.s32.totalorder %s20, 0
      %p47 = por %p45, %p46
      %s49 = sadd.s32 %s48, 1
      %p52 = scmp.eq.s32.totalorder %s14, 1
      %p53 = scmp.ne.s32.totalorder %s48, %s50
      %p54 = scmp.eq.s32.totalorder %s14, 0
      %p55 = por %p53, %p54
      %p56 = scmp.ne.s32.totalorder %s48, %s50
      %p57 = scmp.eq.s32.totalorder %s19, 1
      %p58 = por %p56, %p57
      %p59 = scmp.ne.s32.totalorder %s50, %s51
      %p60 = scmp.eq.s32.totalorder %s19, 0
      %p61 = por %p59, %p60
      %p62 = scmp.ne.s32.totalorder %s50, %s51
      %p63 = scmp.eq.s32.totalorder %s20, 1
      %p64 = por %p62, %p63
      %p66 = scmp.ne.s32.totalorder %s51, %s65
      %p67 = scmp.eq.s32.totalorder %s20, 0
      %p68 = por %p66, %p67
      %s70 = sadd.s32 %s69, 1
      %p73 = scmp.eq.s32.totalorder %s14, 1
      %p74 = scmp.ne.s32.totalorder %s69, %s71
      %p75 = scmp.eq.s32.totalorder %s14, 0
      %p76 = por %p74, %p75
      %p77 = scmp.ne.s32.totalorder %s69, %s71
      %p78 = scmp.eq.s32.totalorder %s19, 1
      %p79 = por %p77, %p78
      %p80 = scmp.ne.s32.totalorder %s71, %s72
      %p81 = scmp.eq.s32.totalorder %s19, 0
      %p82 = por %p80, %p81
      %p83 = scmp.ne.s32.totalorder %s71, %s72
      %p84 = scmp.eq.s32.totalorder %s20, 1
      %p85 = por %p83, %p84
      %p87 = scmp.ne.s32.totalorder %s72, %s86
      %p88 = scmp.eq.s32.totalorder %s20, 0
      %p89 = por %p87, %p88
      %s91 = sadd.s32 %s90, 1
      %p94 = scmp.eq.s32.totalorder %s14, 1
      %p95 = scmp.ne.s32.totalorder %s90, %s92
      %p96 = scmp.eq.s32.totalorder %s14, 0
      %p97 = por %p95, %p96
      %p98 = scmp.ne.s32.totalorder %s90, %s92
      %p99 = scmp.eq.s32.totalorder %s19, 1
      %p100 = por %p98, %p99
      %p101 = scmp.ne.s32.totalorder %s92, %s93
      %p102 = scmp.eq.s32.totalorder %s19, 0
      %p103 = por %p101, %p102
      %p104 = scmp.ne.s32.totalorder %s92, %s93
      %p105 = scmp.eq.s32.totalorder %s20, 1
      %p106 = por %p104, %p105
      %p108 = scmp.ne.s32.totalorder %s93, %s107
      %p109 = scmp.eq.s32.totalorder %s20, 0
      %p110 = por %p108, %p109
      %s112 = sadd.s32 %s111, 1
      %p115 = scmp.eq.s32.totalorder %s14, 1
      %p116 = scmp.ne.s32.totalorder %s111, %s113
      %p117 = scmp.eq.s32.totalorder %s14, 0
      %p118 = por %p116, %p117
      %p119 = scmp.ne.s32.totalorder %s111, %s113
      %p120 = scmp.eq.s32.totalorder %s19, 1
      %p121 = por %p119, %p120
      %p122 = scmp.ne.s32.totalorder %s113, %s114
      %p123 = scmp.eq.s32.totalorder %s19, 0
      %p124 = por %p122, %p123
      %p125 = scmp.ne.s32.totalorder %s113, %s114
      %p126 = scmp.eq.s32.totalorder %s20, 1
      %p127 = por %p125, %p126
      %p129 = scmp.ne.s32.totalorder %s114, %s128
      %p130 = scmp.eq.s32.totalorder %s20, 0
      %p131 = por %p129, %p130
      %s132 = ssub.s32 %s14, %s21
      %p133 = scmp.eq.s32.totalorder %s132, 0
      %s135 = sadd.s32 %s134, 1
      %s136 = scalar_select %p133, %s134, %s135
      %p139 = pneg %p133
      %p140 = scmp.eq.s32.totalorder %s14, 1
      %p141 = por %p139, %p140
      %p142 = scmp.ne.s32.totalorder %s134, %s137
      %p143 = scmp.eq.s32.totalorder %s14, 0
      %p144 = por %p142, %p143
      %p145 = scmp.ne.s32.totalorder %s134, %s137
      %p146 = scmp.eq.s32.totalorder %s19, 1
      %p147 = por %p145, %p146
      %p148 = scmp.ne.s32.totalorder %s137, %s138
      %p149 = scmp.eq.s32.totalorder %s19, 0
      %p150 = por %p148, %p149
      %p151 = scmp.ne.s32.totalorder %s137, %s138
      %p152 = scmp.eq.s32.totalorder %s20, 1
      %p153 = por %p151, %p152
      %p155 = scmp.ne.s32.totalorder %s138, %s154
      %p156 = scmp.eq.s32.totalorder %s20, 0
      %p157 = por %p155, %p156
      %p158 = scmp.le.s32.totalorder 1, %s14
      %p159 = scmp.lt.s32.totalorder %s14, 3
      %p160 = pnand %p158, %p159
      %p161 = pneg %p160
      // Predicated region
      $region9: #{tpu_custom_call.1} parent=5 // pred_check
        _
      $region10: #{tpu_custom_call.1} parent=5 // pred_check_branch
        %163 = sbr.rel (%p160) target = $region12
      $region11: #{tpu_custom_call.1} parent=5 // pred_region
        %s164 = ssub.s32 %s14, 1
        // Predicated region
        $region13: #{tpu_custom_call.1} parent=11 // pred_check
          %p165 = pneg %p61
        $region14: #{tpu_custom_call.1} parent=11 // pred_check_branch
          %167 = sbr.rel (%p165) target = $region16
        $region15: #{tpu_custom_call.1} parent=11 // pred_region
          _
        $region16: #{tpu_custom_call.1} parent=11 // pred_fallthru
          _
        // Predicated region
        $region17: #{tpu_custom_call.1} parent=11 // pred_check
          %p168 = pneg %p82
        $region18: #{tpu_custom_call.1} parent=11 // pred_check_branch
          %170 = sbr.rel (%p168) target = $region20
        $region19: #{tpu_custom_call.1} parent=11 // pred_region
          _
        $region20: #{tpu_custom_call.1} parent=11 // pred_fallthru
          _
        // Predicated region
        $region21: #{tpu_custom_call.1} parent=11 // pred_check
          %p171 = pneg %p103
        $region22: #{tpu_custom_call.1} parent=11 // pred_check_branch
          %173 = sbr.rel (%p171) target = $region24
        $region23: #{tpu_custom_call.1} parent=11 // pred_region
          _
        $region24: #{tpu_custom_call.1} parent=11 // pred_fallthru
          _
        // Predicated region
        $region25: #{tpu_custom_call.1} parent=11 // pred_check
          %p174 = pneg %p124
        $region26: #{tpu_custom_call.1} parent=11 // pred_check_branch
          %176 = sbr.rel (%p174) target = $region28
        $region27: #{tpu_custom_call.1} parent=11 // pred_region
          _
        $region28: #{tpu_custom_call.1} parent=11 // pred_fallthru
          _
      $region12: #{tpu_custom_call.1} parent=5 // pred_fallthru
        _
      %p177 = scmp.lt.s32.totalorder %s14, 2
      // Predicated region
      $region29: #{tpu_custom_call.1} parent=5 // pred_check
        %p178 = pneg %p177
      $region30: #{tpu_custom_call.1} parent=5 // pred_check_branch
        %180 = sbr.rel (%p178) target = $region32
      $region31: #{tpu_custom_call.1} parent=5 // pred_region
        // Predicated region
        $region33: #{tpu_custom_call.1} parent=31 // pred_check
          %p181 = pneg %p34
        $region34: #{tpu_custom_call.1} parent=31 // pred_check_branch
          %183 = sbr.rel (%p181) target = $region36
        $region35: #{tpu_custom_call.1} parent=31 // pred_region
          %p184 = scmp.lt.s32.totalorder %s14, 1
          %s185 = scalar_select %p184, %s14, 1
          %s186 = smul.addr %s185, 2
          %s187 = smul.addr %s186, 4
          %s188 = scalar_lea.vmem %s0, %s187
        $region36: #{tpu_custom_call.1} parent=31 // pred_fallthru
          _
      $region32: #{tpu_custom_call.1} parent=5 // pred_fallthru
        _
      %p189 = scmp.le.s32.totalorder 1, %s14
      %p190 = scmp.lt.s32.totalorder %s14, 3
      %p191 = pnand %p189, %p190
      %p192 = pneg %p191
      // Predicated region
      $region37: #{tpu_custom_call.1} parent=5 // pred_check
        _
      $region38: #{tpu_custom_call.1} parent=5 // pred_check_branch
        %194 = sbr.rel (%p191) target = $region40
      $region39: #{tpu_custom_call.1} parent=5 // pred_region
        %s195 = ssub.s32 %s14, 1
        %p196 = scmp.lt.s32.totalorder %s19, 1
        %s197 = scalar_select %p196, %s19, 1
        %s198 = smul.addr %s197, 2
        %s199 = smul.addr %s198, 4
        %s200 = scalar_lea.vmem %s0, %s199
        %p201 = pneg %p40
        %p202 = pneg %p37
        %p203 = pneg %p61
        %p204 = pneg %p58
        %p205 = pneg %p82
        %p206 = pneg %p79
        %p207 = pneg %p103
        %p208 = pneg %p100
        %p209 = pneg %p124
        %p210 = pneg %p121
        %p211 = pneg %p150
        %p212 = pneg %p147
        %s213 = sand.u32 %s137, 1
        %s214 = scalar_lea.sflag [#allocation3], %s213
        %s215 = sand.u32 %s137, 1
        %s216 = smul.addr %s215, 16
        %s217 = scalar_lea.vmem [#allocation2], %s216
        %p218 = scmp.lt.s32.totalorder %s19, 1
        %s219 = scalar_select %p218, %s19, 1
        %s220 = smul.addr %s219, 2
        %s221 = smul.addr %s220, 4
        %s222 = scalar_lea.vmem %s0, %s221
        %v224 = vld [vmem:[%s1] sm:$0xf]
        %v225 = vld [vmem:[%s1 + $0x4] sm:$0xf]
        %v226 = vld [vmem:[%s1 + $0x8] sm:$0x7]
        %v227 = vld [vmem:[%s222] sm:$0xff]
        %v228 = vld [vmem:[%s2] sm:$0xff]
        %v229 = vld [vmem:[%s2 + $0x8] sm:$0xff]
        %v230 = vld [vmem:[%s2 + $0x10] sm:$0x3f]
        %232 = vset.pattern.permute.xlu0 0
        %233 = vperm.xlu0 %232, %v228
        %v234 = vpop.permute.xlu0 %233
        %237 = vset.pattern.permute.xlu0 0
        %238 = vperm.xlu0 %237, %v229
        %v239 = vpop.permute.xlu0 %238
        %242 = vset.pattern.permute.xlu0 0
        %243 = vperm.xlu0 %242, %v230
        %v244 = vpop.permute.xlu0 %243
        %v249 = vunpack.c.l.b16 %v224
        %v250 = vunpack.c.l.b16 %v225
        %v251 = vunpack.c.l.b16 %v226
        %v252 = vpack.c.b16 %v250, %v249
        %v253 = vpack.c.b16 %v251, %v251
        %v255 = vunpack.c.l.b16 %v227
        %v256 = vunpack.c.h.b16 %v227
        %v257 = vpack.c.b16 %v255, %v255
        %v258 = vpack.c.b16 %v256, %v256
        %vm259 = vcmask 64512
        %v261 = vsel %vm259, %v252, 0
        %v264 = vsel %vm259, %v253, 0
        %vm266 = vcmask 1043456
        %v268 = vsel %vm266, %v257, 0
        %v271 = vsel %vm266, %v258, 0
        %273 = vmatprep.subr.bf16.mxu0 %v271
        %274 = vmatpush1.bf16.msra.mxu0 %v268
        %275 = vmatprep.subr.bf16.mxu0 0
        %276 = vmatpush1.bf16.msra.mxu0 0
        %277 = vmatprep.subr.bf16.mxu0 0
        %278 = vmatpush1.bf16.msra.mxu0 0
        %279 = vmatprep.subr.bf16.mxu0 0
        %280 = vmatpush1.bf16.msra.mxu0 0
        %281 = vmatprep.subr.bf16.mxu0 0
        %282 = vmatpush1.bf16.msra.mxu0 0
        %283 = vmatprep.subr.bf16.mxu0 0
        %284 = vmatpush1.bf16.msra.mxu0 0
        %285 = vmatprep.subr.bf16.mxu0 0
        %286 = vmatpush1.bf16.msra.mxu0 0
        %287 = vmatprep.subr.bf16.mxu0 0
        %288 = vmatpush1.bf16.msra.mxu0 0
        %289 = vmatprep.subr.bf16.mxu0 0
        %290 = vmatpush1.bf16.msra.mxu0 0
        %291 = vmatprep.subr.bf16.mxu0 0
        %292 = vmatpush1.bf16.msra.mxu0 0
        %293 = vmatprep.subr.bf16.mxu0 0
        %294 = vmatpush1.bf16.msra.mxu0 0
        %295 = vmatprep.subr.bf16.mxu0 0
        %296 = vmatpush1.bf16.msra.mxu0 0
        %297 = vmatprep.subr.bf16.mxu0 0
        %298 = vmatpush1.bf16.msra.mxu0 0
        %299 = vmatprep.subr.bf16.mxu0 0
        %300 = vmatpush1.bf16.msra.mxu0 0
        %301 = vmatprep.subr.bf16.mxu0 0
        %302 = vmatpush1.bf16.msra.mxu0 0
        %303 = vmatprep.subr.bf16.mxu0 0
        %304 = vmatpush1.bf16.msra.mxu0 0
        %305 = vmatprep.mubr.bf16.mxu0 0
        %306 = vmatmul.mubr.bf16.gmra.mrb[0].mxu0 %v261
        %v307 = vpop.f32.mrb[0].mxu0
        %v308 = vadd.f32 %v234, %v307
        %v309 = vpop.f32.mrb[0].mxu0
        %v310 = vadd.f32 %v234, %v309
        %v311 = vpop.f32.mrb[0].mxu0
        %v312 = vadd.f32 %v239, %v311
        %v313 = vpop.f32.mrb[0].mxu0
        %v314 = vadd.f32 %v239, %v313
        %315 = vmatprep.mubr.bf16.mxu0 0
        %316 = vmatmul.mubr.bf16.gmra.mrb[0].mxu0 %v264
        %v317 = vpop.f32.mrb[0].mxu0
        %v318 = vadd.f32 %v244, %v317
        %v319 = vpop.f32.mrb[0].mxu0
        %v320 = vadd.f32 %v244, %v319
        %v321 = vpop.f32.mrb[0].mxu0
        %v322 = vpop.f32.mrb[0].mxu0
        %323 = vdwg.mxu0
        %v324 = vpack.c.bf16 %v312, %v308
        %v325 = vpack.c.bf16 %v314, %v310
        %v326 = vsel %vm266, %v318, -inf
        %v327 = vrot.slane %v326, 4
        %v328 = vmax.f32 %v326, %v327
        %v329 = vrot.slane %v328, 2
        %v330 = vmax.f32 %v328, %v329
        %v331 = vrot.slane %v330, 1
        %v332 = vmax.f32 %v330, %v331
        %v333 = vsel %vm266, %v320, -inf
        %v334 = vrot.slane %v333, 4
        %v335 = vmax.f32 %v333, %v334
        %v336 = vrot.slane %v335, 2
        %v337 = vmax.f32 %v335, %v336
        %v338 = vrot.slane %v337, 1
        %v339 = vmax.f32 %v337, %v338
        %v340 = vsub.f32 %v318, %v332
        %v341 = vsub.f32 %v320, %v339
        %v342 = vmul.f32 %v340, 1.442695
        %v343 = vpow.pop %v342
        %v344 = vmul.f32 %v341, 1.442695
        %v345 = vpow.pop %v344
        %v346 = vsel %vm266, %v343, 0.0
        %v347 = vrot.slane %v346, 4
        %v348 = vadd.f32 %v346, %v347
        %v349 = vrot.slane %v348, 2
        %v350 = vadd.f32 %v348, %v349
        %v351 = vrot.slane %v350, 1
        %v352 = vadd.f32 %v350, %v351
        %v353 = vsel %vm266, %v345, 0.0
        %v354 = vrot.slane %v353, 4
        %v355 = vadd.f32 %v353, %v354
        %v356 = vrot.slane %v355, 2
        %v357 = vadd.f32 %v355, %v356
        %v358 = vrot.slane %v357, 1
        %v359 = vadd.f32 %v357, %v358
        %v360 = vrcp.pop %v352
        %v361 = vrcp.pop %v359
        %v362 = vmul.f32 %v343, %v360
        %v363 = vmul.f32 %v345, %v361
        %v364 = vpack.c.bf16 %v318, %v318
        %v365 = vpack.c.bf16 %v320, %v320
        %v366 = vpack.c.bf16 %v362, %v362
        %v367 = vpack.c.bf16 %v363, %v363
        %v370 = vrot.slane %v364, 2
        %v371 = vrot.slane %v365, 2
        %374 = vmatprep.subr.bf16.mxu0 %v367
        %375 = vmatpush1.bf16.xpose.msra.mxu0 %v366
        %376 = vmatprep.subr.bf16.mxu0 0
        %377 = vmatpush1.bf16.xpose.msra.mxu0 0
        %378 = vmatprep.subr.bf16.mxu0 0
        %379 = vmatpush1.bf16.xpose.msra.mxu0 0
        %380 = vmatprep.subr.bf16.mxu0 0
        %381 = vmatpush1.bf16.xpose.msra.mxu0 0
        %382 = vmatprep.subr.bf16.mxu0 0
        %383 = vmatpush1.bf16.xpose.msra.mxu0 0
        %384 = vmatprep.subr.bf16.mxu0 0
        %385 = vmatpush1.bf16.xpose.msra.mxu0 0
        %386 = vmatprep.subr.bf16.mxu0 0
        %387 = vmatpush1.bf16.xpose.msra.mxu0 0
        %388 = vmatprep.subr.bf16.mxu0 0
        %389 = vmatpush1.bf16.xpose.msra.mxu0 0
        %390 = vmatprep.subr.bf16.mxu0 0
        %391 = vmatpush1.bf16.xpose.msra.mxu0 0
        %392 = vmatprep.subr.bf16.mxu0 0
        %393 = vmatpush1.bf16.xpose.msra.mxu0 0
        %394 = vmatprep.subr.bf16.mxu0 0
        %395 = vmatpush1.bf16.xpose.msra.mxu0 0
        %396 = vmatprep.subr.bf16.mxu0 0
        %397 = vmatpush1.bf16.xpose.msra.mxu0 0
        %398 = vmatprep.subr.bf16.mxu0 0
        %399 = vmatpush1.bf16.xpose.msra.mxu0 0
        %400 = vmatprep.subr.bf16.mxu0 0
        %401 = vmatpush1.bf16.xpose.msra.mxu0 0
        %402 = vmatprep.subr.bf16.mxu0 0
        %403 = vmatpush1.bf16.xpose.msra.mxu0 0
        %404 = vmatprep.subr.bf16.mxu0 0
        %405 = vmatpush1.bf16.xpose.msra.mxu0 0
        %406 = vmatprep.mubr.bf16.mxu0 %v371
        %407 = vmatmul.mubr.bf16.gmra.mrb[0].mxu0 %v370
        %v408 = vpop.f32.mrb[0].mxu0
        %v409 = vadd.f32 0.0, %v408
        %v410 = vpop.f32.mrb[0].mxu0
        %v411 = vpop.f32.mrb[0].mxu0
        %v412 = vpop.f32.mrb[0].mxu0
        %413 = vdwg.mxu0
        %vm414 = vcmask 31744
        %v415 = vsel %vm414, %v409, 0.0
        %v416 = vsel %vm259, %v415, 0.0
        %vm417 = vcmask 97280
        %v418 = vsel %vm417, %v416, 0.0
        %420 = vrot.lane.b32.xlu0 %v409, 4
        %v421 = vpop.permute.xlu0 %420
        %v423 = vsel %vm414, 0.0, %v421
        %v424 = vsel %vm259, %v423, 0.0
        %v425 = vsel %vm417, %v424, 0.0
        %426 = vrot.lane.b32.xlu0 %v409, 8
        %v427 = vpop.permute.xlu0 %426
        %v429 = vsel %vm259, 0.0, %v427
        %v430 = vsel %vm417, %v429, 0.0
        %431 = vrot.lane.b32.xlu0 %v409, 12
        %v432 = vpop.permute.xlu0 %431
        %v434 = vsel %vm417, 0.0, %v432
        %v436 = vrot.slane %v425, 6
        %v439 = vrot.slane %v430, 4
        %v442 = vrot.slane %v434, 2
        %vm444 = vcmask 1041408
        %v445 = vsel %vm444, %v418, %v436
        %v446 = vsel %vm266, %v445, %v439
        %vm447 = vcmask 1045504
        %v448 = vsel %vm447, %v446, %v442
        %v449 = vpack.c.bf16 %v448, %v448
        %v450 = vld [vmem:[%s3] sm:$0xf]
        %v451 = vld [vmem:[%s3 + $0x4] sm:$0xf]
        %v452 = vld [vmem:[%s3 + $0x8] sm:$0xf]
        %v453 = vld [vmem:[%s3 + $0xc] sm:$0xf]
        %v454 = vld [vmem:[%s3 + $0x10] sm:$0xf]
        %v455 = vld [vmem:[%s3 + $0x14] sm:$0xf]
        %v456 = vld [vmem:[%s3 + $0x18] sm:$0xf]
        %v457 = vld [vmem:[%s3 + $0x1c] sm:$0xf]
        %v458 = vld [vmem:[%s3 + $0x20] sm:$0xf]
        %v459 = vld [vmem:[%s3 + $0x24] sm:$0xf]
        %v460 = vld [vmem:[%s3 + $0x28] sm:$0xf]
        %v461 = vld [vmem:[%s3 + $0x2c] sm:$0xf]
        %v462 = vld [vmem:[%s3 + $0x30] sm:$0x3]
        %v476 = vunpack.c.l.b16 %v450
        %v477 = vunpack.c.l.b16 %v451
        %v478 = vunpack.c.l.b16 %v452
        %v479 = vunpack.c.l.b16 %v453
        %v480 = vunpack.c.l.b16 %v454
        %v481 = vunpack.c.l.b16 %v455
        %v482 = vunpack.c.l.b16 %v456
        %v483 = vunpack.c.l.b16 %v457
        %v484 = vunpack.c.l.b16 %v458
        %v485 = vunpack.c.l.b16 %v459
        %v486 = vunpack.c.l.b16 %v460
        %v487 = vunpack.c.l.b16 %v461
        %v488 = vunpack.c.l.b16 %v462
        %v489 = vpack.c.b16 %v477, %v476
        %v490 = vpack.c.b16 %v479, %v478
        %v491 = vpack.c.b16 %v481, %v480
        %v492 = vpack.c.b16 %v483, %v482
        %v493 = vpack.c.b16 %v485, %v484
        %v494 = vpack.c.b16 %v487, %v486
        %v495 = vpack.c.b16 %v488, %v488
        %vm496 = vcmask 130048
        %v498 = vsel %vm496, %v489, 0
        %v501 = vsel %vm496, %v490, 0
        %v504 = vsel %vm496, %v491, 0
        %v507 = vsel %vm496, %v492, 0
        %v510 = vsel %vm496, %v493, 0
        %v513 = vsel %vm496, %v494, 0
        %v516 = vsel %vm496, %v495, 0
        %518 = vmatprep.subr.bf16.mxu0 %v325
        %519 = vmatpush1.bf16.msra.mxu0 %v324
        %520 = vmatprep.subr.bf16.mxu0 0
        %521 = vmatpush1.bf16.msra.mxu0 0
        %522 = vmatprep.subr.bf16.mxu0 0
        %523 = vmatpush1.bf16.msra.mxu0 0
        %524 = vmatprep.subr.bf16.mxu0 0
        %525 = vmatpush1.bf16.msra.mxu0 0
        %526 = vmatprep.subr.bf16.mxu0 0
        %527 = vmatpush1.bf16.msra.mxu0 0
        %528 = vmatprep.subr.bf16.mxu0 0
        %529 = vmatpush1.bf16.msra.mxu0 0
        %530 = vmatprep.subr.bf16.mxu0 0
        %531 = vmatpush1.bf16.msra.mxu0 0
        %532 = vmatprep.subr.bf16.mxu0 0
        %533 = vmatpush1.bf16.msra.mxu0 0
        %534 = vmatprep.subr.bf16.mxu0 0
        %535 = vmatpush1.bf16.msra.mxu0 0
        %536 = vmatprep.subr.bf16.mxu0 0
        %537 = vmatpush1.bf16.msra.mxu0 0
        %538 = vmatprep.subr.bf16.mxu0 0
        %539 = vmatpush1.bf16.msra.mxu0 0
        %540 = vmatprep.subr.bf16.mxu0 0
        %541 = vmatpush1.bf16.msra.mxu0 0
        %542 = vmatprep.subr.bf16.mxu0 0
        %543 = vmatpush1.bf16.msra.mxu0 0
        %544 = vmatprep.subr.bf16.mxu0 0
        %545 = vmatpush1.bf16.msra.mxu0 0
        %546 = vmatprep.subr.bf16.mxu0 0
        %547 = vmatpush1.bf16.msra.mxu0 0
        %548 = vmatprep.subr.bf16.mxu0 0
        %549 = vmatpush1.bf16.msra.mxu0 0
        %550 = vmatprep.mubr.bf16.mxu0 0
        %551 = vmatmul.mubr.bf16.gmra.mrb[0].mxu0 %v498
        %v552 = vpop.f32.mrb[0].mxu0
        %v553 = vadd.f32 0.0, %v552
        %v554 = vpop.f32.mrb[0].mxu0
        %v555 = vadd.f32 0.0, %v554
        %v556 = vpop.f32.mrb[0].mxu0
        %v557 = vadd.f32 0.0, %v556
        %v558 = vpop.f32.mrb[0].mxu0
        %v559 = vadd.f32 0.0, %v558
        %560 = vmatprep.mubr.bf16.mxu0 0
        %561 = vmatmul.mubr.bf16.gmra.mrb[0].mxu0 %v501
        %v562 = vpop.f32.mrb[0].mxu0
        %v563 = vadd.f32 0.0, %v562
        %v564 = vpop.f32.mrb[0].mxu0
        %v565 = vadd.f32 0.0, %v564
        %v566 = vpop.f32.mrb[0].mxu0
        %v567 = vadd.f32 0.0, %v566
        %v568 = vpop.f32.mrb[0].mxu0
        %v569 = vadd.f32 0.0, %v568
        %570 = vmatprep.mubr.bf16.mxu0 0
        %571 = vmatmul.mubr.bf16.gmra.mrb[0].mxu0 %v504
        %v572 = vpop.f32.mrb[0].mxu0
        %v573 = vadd.f32 0.0, %v572
        %v574 = vpop.f32.mrb[0].mxu0
        %v575 = vadd.f32 0.0, %v574
        %v576 = vpop.f32.mrb[0].mxu0
        %v577 = vadd.f32 0.0, %v576
        %v578 = vpop.f32.mrb[0].mxu0
        %v579 = vadd.f32 0.0, %v578
        %580 = vmatprep.mubr.bf16.mxu0 0
        %581 = vmatmul.mubr.bf16.gmra.mrb[0].mxu0 %v507
        %v582 = vpop.f32.mrb[0].mxu0
        %v583 = vadd.f32 0.0, %v582
        %v584 = vpop.f32.mrb[0].mxu0
        %v585 = vadd.f32 0.0, %v584
        %v586 = vpop.f32.mrb[0].mxu0
        %v587 = vadd.f32 0.0, %v586
        %v588 = vpop.f32.mrb[0].mxu0
        %v589 = vadd.f32 0.0, %v588
        %590 = vmatprep.mubr.bf16.mxu0 0
        %591 = vmatmul.mubr.bf16.gmra.mrb[0].mxu0 %v510
        %v592 = vpop.f32.mrb[0].mxu0
        %v593 = vadd.f32 0.0, %v592
        %v594 = vpop.f32.mrb[0].mxu0
        %v595 = vadd.f32 0.0, %v594
        %v596 = vpop.f32.mrb[0].mxu0
        %v597 = vadd.f32 0.0, %v596
        %v598 = vpop.f32.mrb[0].mxu0
        %v599 = vadd.f32 0.0, %v598
        %600 = vmatprep.mubr.bf16.mxu0 0
        %601 = vmatmul.mubr.bf16.gmra.mrb[0].mxu0 %v513
        %v602 = vpop.f32.mrb[0].mxu0
        %v603 = vadd.f32 0.0, %v602
        %v604 = vpop.f32.mrb[0].mxu0
        %v605 = vadd.f32 0.0, %v604
        %v606 = vpop.f32.mrb[0].mxu0
        %v607 = vadd.f32 0.0, %v606
        %v608 = vpop.f32.mrb[0].mxu0
        %v609 = vadd.f32 0.0, %v608
        %610 = vmatprep.mubr.bf16.mxu0 0
        %611 = vmatmul.mubr.bf16.gmra.mrb[0].mxu0 %v516
        %v612 = vpop.f32.mrb[0].mxu0
        %v613 = vadd.f32 0.0, %v612
        %v614 = vpop.f32.mrb[0].mxu0
        %v615 = vadd.f32 0.0, %v614
        %v616 = vpop.f32.mrb[0].mxu0
        %v617 = vpop.f32.mrb[0].mxu0
        %618 = vdwg.mxu0
        %v619 = vld [vmem:[%s4] sm:$0xff]
        %v620 = vld [vmem:[%s4 + $0x8] sm:$0xff]
        %v621 = vld [vmem:[%s4 + $0x10] sm:$0xff]
        %v622 = vld [vmem:[%s4 + $0x18] sm:$0xff]
        %v623 = vld [vmem:[%s4 + $0x20] sm:$0xff]
        %v624 = vld [vmem:[%s4 + $0x28] sm:$0xff]
        %v625 = vld [vmem:[%s4 + $0x30] sm:$0x1]
        %v626 = vld [vmem:[%s4 + $0x38] sm:$0x1]
        %v629 = vrot.slane %v318, 4
        %v630 = vrot.slane %v320, 4
        %633 = vrot.lane.b32.xlu0 %v629, 34
        %v634 = vpop.permute.xlu0 %633
        %635 = vrot.lane.b32.xlu0 %v630, 34
        %v636 = vpop.permute.xlu0 %635
        %v637 = vlaneseq
        %v638 = vand.u32 %v637, 127
        %vm639 = vcmp.lt.s32.totalorder %v638, 34
        %v640 = vsel %vm639, %v634, %v636
        %v641 = vsel %vm639, %v636, %v634
        %v642 = vlaneseq
        %v643 = vshrl.u32 %v642, 7
        %v644 = vsub.s32 0, %v643
        %v645 = vrot.slane %v619, %v644
        %v646 = vlaneseq
        %v647 = vshrl.u32 %v646, 7
        %v648 = vsub.s32 0, %v647
        %v649 = vrot.slane %v620, %v648
        %v650 = vmul.f32 %v641, %v645
        %v651 = vmul.f32 %v640, %v649
        %v652 = vlaneseq
        %v653 = vshrl.u32 %v652, 7
        %v654 = vsub.s32 0, %v653
        %v655 = vrot.slane %v553, %v654
        %v656 = vlaneseq
        %v657 = vshrl.u32 %v656, 7
        %v658 = vsub.s32 0, %v657
        %v659 = vrot.slane %v555, %v658
        %v660 = vmul.f32 %v655, %v650
        %v661 = vmul.f32 %v659, %v651
        %v662 = vadd.f32 %v660, 0.0
        %v663 = vadd.f32 %v661, 0.0
        %v664 = vlaneseq
        %v665 = vshrl.u32 %v664, 7
        %v666 = vsub.s32 1, %v665
        %v667 = vrot.slane %v553, %v666
        %v668 = vlaneseq
        %v669 = vshrl.u32 %v668, 7
        %v670 = vsub.s32 1, %v669
        %v671 = vrot.slane %v555, %v670
        %v672 = vmul.f32 %v667, %v650
        %v673 = vmul.f32 %v671, %v651
        %v674 = vadd.f32 %v672, 0.0
        %v675 = vadd.f32 %v673, 0.0
        %v676 = vlaneseq
        %v677 = vshrl.u32 %v676, 7
        %v678 = vsub.s32 2, %v677
        %v679 = vrot.slane %v553, %v678
        %v680 = vlaneseq
        %v681 = vshrl.u32 %v680, 7
        %v682 = vsub.s32 2, %v681
        %v683 = vrot.slane %v555, %v682
        %v684 = vmul.f32 %v679, %v650
        %v685 = vmul.f32 %v683, %v651
        %v686 = vadd.f32 %v684, 0.0
        %v687 = vadd.f32 %v685, 0.0
        %v688 = vlaneseq
        %v689 = vshrl.u32 %v688, 7
        %v690 = vsub.s32 3, %v689
        %v691 = vrot.slane %v553, %v690
        %v692 = vlaneseq
        %v693 = vshrl.u32 %v692, 7
        %v694 = vsub.s32 3, %v693
        %v695 = vrot.slane %v555, %v694
        %v696 = vmul.f32 %v691, %v650
        %v697 = vmul.f32 %v695, %v651
        %v698 = vadd.f32 %v696, 0.0
        %v699 = vadd.f32 %v697, 0.0
        %700 = vrot.lane.b32.xlu0 %v629, 33
        %v701 = vpop.permute.xlu0 %700
        %702 = vrot.lane.b32.xlu0 %v630, 33
        %v703 = vpop.permute.xlu0 %702
        %vm704 = vcmp.lt.s32.totalorder %v638, 33
        %v705 = vsel %vm704, %v701, %v703
        %v706 = vsel %vm704, %v703, %v701
        %v707 = vlaneseq
        %v708 = vshrl.u32 %v707, 7
        %v709 = vsub.s32 1, %v708
        %v710 = vrot.slane %v619, %v709
        %v711 = vlaneseq
        %v712 = vshrl.u32 %v711, 7
        %v713 = vsub.s32 1, %v712
        %v714 = vrot.slane %v620, %v713
        %v715 = vmul.f32 %v706, %v710
        %v716 = vmul.f32 %v705, %v714
        %v717 = vlaneseq
        %v718 = vshrl.u32 %v717, 7
        %v719 = vsub.s32 4, %v718
        %v720 = vrot.slane %v553, %v719
        %v721 = vlaneseq
        %v722 = vshrl.u32 %v721, 7
        %v723 = vsub.s32 4, %v722
        %v724 = vrot.slane %v555, %v723
        %v725 = vmul.f32 %v720, %v715
        %v726 = vmul.f32 %v724, %v716
        %v727 = vadd.f32 %v662, %v725
        %v728 = vadd.f32 %v663, %v726
        %v729 = vlaneseq
        %v730 = vshrl.u32 %v729, 7
        %v731 = vsub.s32 5, %v730
        %v732 = vrot.slane %v553, %v731
        %v733 = vlaneseq
        %v734 = vshrl.u32 %v733, 7
        %v735 = vsub.s32 5, %v734
        %v736 = vrot.slane %v555, %v735
        %v737 = vmul.f32 %v732, %v715
        %v738 = vmul.f32 %v736, %v716
        %v739 = vadd.f32 %v674, %v737
        %v740 = vadd.f32 %v675, %v738
        %v741 = vlaneseq
        %v742 = vshrl.u32 %v741, 7
        %v743 = vsub.s32 6, %v742
        %v744 = vrot.slane %v553, %v743
        %v745 = vlaneseq
        %v746 = vshrl.u32 %v745, 7
        %v747 = vsub.s32 6, %v746
        %v748 = vrot.slane %v555, %v747
        %v749 = vmul.f32 %v744, %v715
        %v750 = vmul.f32 %v748, %v716
        %v751 = vadd.f32 %v686, %v749
        %v752 = vadd.f32 %v687, %v750
        %v753 = vlaneseq
        %v754 = vshrl.u32 %v753, 7
        %v755 = vsub.s32 7, %v754
        %v756 = vrot.slane %v553, %v755
        %v757 = vlaneseq
        %v758 = vshrl.u32 %v757, 7
        %v759 = vsub.s32 7, %v758
        %v760 = vrot.slane %v555, %v759
        %v761 = vmul.f32 %v756, %v715
        %v762 = vmul.f32 %v760, %v716
        %v763 = vadd.f32 %v698, %v761
        %v764 = vadd.f32 %v699, %v762
        %765 = vrot.lane.b32.xlu0 %v629, 32
        %v766 = vpop.permute.xlu0 %765
        %767 = vrot.lane.b32.xlu0 %v630, 32
        %v768 = vpop.permute.xlu0 %767
        %vm769 = vcmp.lt.s32.totalorder %v638, 32
        %v770 = vsel %vm769, %v766, %v768
        %v771 = vsel %vm769, %v768, %v766
        %v772 = vlaneseq
        %v773 = vshrl.u32 %v772, 7
        %v774 = vsub.s32 2, %v773
        %v775 = vrot.slane %v619, %v774
        %v776 = vlaneseq
        %v777 = vshrl.u32 %v776, 7
        %v778 = vsub.s32 2, %v777
        %v779 = vrot.slane %v620, %v778
        %v780 = vmul.f32 %v771, %v775
        %v781 = vmul.f32 %v770, %v779
        %v782 = vlaneseq
        %v783 = vshrl.u32 %v782, 7
        %v784 = vsub.s32 0, %v783
        %v785 = vrot.slane %v557, %v784
        %v786 = vlaneseq
        %v787 = vshrl.u32 %v786, 7
        %v788 = vsub.s32 0, %v787
        %v789 = vrot.slane %v559, %v788
        %v790 = vmul.f32 %v785, %v780
        %v791 = vmul.f32 %v789, %v781
        %v792 = vadd.f32 %v727, %v790
        %v793 = vadd.f32 %v728, %v791
        %v794 = vlaneseq
        %v795 = vshrl.u32 %v794, 7
        %v796 = vsub.s32 1, %v795
        %v797 = vrot.slane %v557, %v796
        %v798 = vlaneseq
        %v799 = vshrl.u32 %v798, 7
        %v800 = vsub.s32 1, %v799
        %v801 = vrot.slane %v559, %v800
        %v802 = vmul.f32 %v797, %v780
        %v803 = vmul.f32 %v801, %v781
        %v804 = vadd.f32 %v739, %v802
        %v805 = vadd.f32 %v740, %v803
        %v806 = vlaneseq
        %v807 = vshrl.u32 %v806, 7
        %v808 = vsub.s32 2, %v807
        %v809 = vrot.slane %v557, %v808
        %v810 = vlaneseq
        %v811 = vshrl.u32 %v810, 7
        %v812 = vsub.s32 2, %v811
        %v813 = vrot.slane %v559, %v812
        %v814 = vmul.f32 %v809, %v780
        %v815 = vmul.f32 %v813, %v781
        %v816 = vadd.f32 %v751, %v814
        %v817 = vadd.f32 %v752, %v815
        %v818 = vlaneseq
        %v819 = vshrl.u32 %v818, 7
        %v820 = vsub.s32 3, %v819
        %v821 = vrot.slane %v557, %v820
        %v822 = vlaneseq
        %v823 = vshrl.u32 %v822, 7
        %v824 = vsub.s32 3, %v823
        %v825 = vrot.slane %v559, %v824
        %v826 = vmul.f32 %v821, %v780
        %v827 = vmul.f32 %v825, %v781
        %v828 = vadd.f32 %v763, %v826
        %v829 = vadd.f32 %v764, %v827
        %830 = vrot.lane.b32.xlu0 %v629, 31
        %v831 = vpop.permute.xlu0 %830
        %832 = vrot.lane.b32.xlu0 %v630, 31
        %v833 = vpop.permute.xlu0 %832
        %vm834 = vcmp.lt.s32.totalorder %v638, 31
        %v835 = vsel %vm834, %v831, %v833
        %v836 = vsel %vm834, %v833, %v831
        %v837 = vlaneseq
        %v838 = vshrl.u32 %v837, 7
        %v839 = vsub.s32 3, %v838
        %v840 = vrot.slane %v619, %v839
        %v841 = vlaneseq
        %v842 = vshrl.u32 %v841, 7
        %v843 = vsub.s32 3, %v842
        %v844 = vrot.slane %v620, %v843
        %v845 = vmul.f32 %v836, %v840
        %v846 = vmul.f32 %v835, %v844
        %v847 = vlaneseq
        %v848 = vshrl.u32 %v847, 7
        %v849 = vsub.s32 4, %v848
        %v850 = vrot.slane %v557, %v849
        %v851 = vlaneseq
        %v852 = vshrl.u32 %v851, 7
        %v853 = vsub.s32 4, %v852
        %v854 = vrot.slane %v559, %v853
        %v855 = vmul.f32 %v850, %v845
        %v856 = vmul.f32 %v854, %v846
        %v857 = vadd.f32 %v792, %v855
        %v858 = vadd.f32 %v793, %v856
        %v859 = vlaneseq
        %v860 = vshrl.u32 %v859, 7
        %v861 = vsub.s32 5, %v860
        %v862 = vrot.slane %v557, %v861
        %v863 = vlaneseq
        %v864 = vshrl.u32 %v863, 7
        %v865 = vsub.s32 5, %v864
        %v866 = vrot.slane %v559, %v865
        %v867 = vmul.f32 %v862, %v845
        %v868 = vmul.f32 %v866, %v846
        %v869 = vadd.f32 %v804, %v867
        %v870 = vadd.f32 %v805, %v868
        %v871 = vlaneseq
        %v872 = vshrl.u32 %v871, 7
        %v873 = vsub.s32 6, %v872
        %v874 = vrot.slane %v557, %v873
        %v875 = vlaneseq
        %v876 = vshrl.u32 %v875, 7
        %v877 = vsub.s32 6, %v876
        %v878 = vrot.slane %v559, %v877
        %v879 = vmul.f32 %v874, %v845
        %v880 = vmul.f32 %v878, %v846
        %v881 = vadd.f32 %v816, %v879
        %v882 = vadd.f32 %v817, %v880
        %v883 = vlaneseq
        %v884 = vshrl.u32 %v883, 7
        %v885 = vsub.s32 7, %v884
        %v886 = vrot.slane %v557, %v885
        %v887 = vlaneseq
        %v888 = vshrl.u32 %v887, 7
        %v889 = vsub.s32 7, %v888
        %v890 = vrot.slane %v559, %v889
        %v891 = vmul.f32 %v886, %v845
        %v892 = vmul.f32 %v890, %v846
        %v893 = vadd.f32 %v828, %v891
        %v894 = vadd.f32 %v829, %v892
        %895 = vrot.lane.b32.xlu0 %v629, 30
        %v896 = vpop.permute.xlu0 %895
        %897 = vrot.lane.b32.xlu0 %v630, 30
        %v898 = vpop.permute.xlu0 %897
        %vm899 = vcmp.lt.s32.totalorder %v638, 30
        %v900 = vsel %vm899, %v896, %v898
        %v901 = vsel %vm899, %v898, %v896
        %v902 = vlaneseq
        %v903 = vshrl.u32 %v902, 7
        %v904 = vsub.s32 4, %v903
        %v905 = vrot.slane %v619, %v904
        %v906 = vlaneseq
        %v907 = vshrl.u32 %v906, 7
        %v908 = vsub.s32 4, %v907
        %v909 = vrot.slane %v620, %v908
        %v910 = vmul.f32 %v901, %v905
        %v911 = vmul.f32 %v900, %v909
        %v912 = vlaneseq
        %v913 = vshrl.u32 %v912, 7
        %v914 = vsub.s32 0, %v913
        %v915 = vrot.slane %v563, %v914
        %v916 = vlaneseq
        %v917 = vshrl.u32 %v916, 7
        %v918 = vsub.s32 0, %v917
        %v919 = vrot.slane %v565, %v918
        %v920 = vmul.f32 %v915, %v910
        %v921 = vmul.f32 %v919, %v911
        %v922 = vadd.f32 %v857, %v920
        %v923 = vadd.f32 %v858, %v921
        %v924 = vlaneseq
        %v925 = vshrl.u32 %v924, 7
        %v926 = vsub.s32 1, %v925
        %v927 = vrot.slane %v563, %v926
        %v928 = vlaneseq
        %v929 = vshrl.u32 %v928, 7
        %v930 = vsub.s32 1, %v929
        %v931 = vrot.slane %v565, %v930
        %v932 = vmul.f32 %v927, %v910
        %v933 = vmul.f32 %v931, %v911
        %v934 = vadd.f32 %v869, %v932
        %v935 = vadd.f32 %v870, %v933
        %v936 = vlaneseq
        %v937 = vshrl.u32 %v936, 7
        %v938 = vsub.s32 2, %v937
        %v939 = vrot.slane %v563, %v938
        %v940 = vlaneseq
        %v941 = vshrl.u32 %v940, 7
        %v942 = vsub.s32 2, %v941
        %v943 = vrot.slane %v565, %v942
        %v944 = vmul.f32 %v939, %v910
        %v945 = vmul.f32 %v943, %v911
        %v946 = vadd.f32 %v881, %v944
        %v947 = vadd.f32 %v882, %v945
        %v948 = vlaneseq
        %v949 = vshrl.u32 %v948, 7
        %v950 = vsub.s32 3, %v949
        %v951 = vrot.slane %v563, %v950
        %v952 = vlaneseq
        %v953 = vshrl.u32 %v952, 7
        %v954 = vsub.s32 3, %v953
        %v955 = vrot.slane %v565, %v954
        %v956 = vmul.f32 %v951, %v910
        %v957 = vmul.f32 %v955, %v911
        %v958 = vadd.f32 %v893, %v956
        %v959 = vadd.f32 %v894, %v957
        %960 = vrot.lane.b32.xlu0 %v629, 18
        %v961 = vpop.permute.xlu0 %960
        %962 = vrot.lane.b32.xlu0 %v630, 18
        %v963 = vpop.permute.xlu0 %962
        %vm964 = vcmp.lt.s32.totalorder %v638, 18
        %v965 = vsel %vm964, %v961, %v963
        %v966 = vsel %vm964, %v963, %v961
        %v967 = vlaneseq
        %v968 = vshrl.u32 %v967, 7
        %v969 = vsub.s32 5, %v968
        %v970 = vrot.slane %v619, %v969
        %v971 = vlaneseq
        %v972 = vshrl.u32 %v971, 7
        %v973 = vsub.s32 5, %v972
        %v974 = vrot.slane %v620, %v973
        %v975 = vmul.f32 %v966, %v970
        %v976 = vmul.f32 %v965, %v974
        %v977 = vlaneseq
        %v978 = vshrl.u32 %v977, 7
        %v979 = vsub.s32 4, %v978
        %v980 = vrot.slane %v563, %v979
        %v981 = vlaneseq
        %v982 = vshrl.u32 %v981, 7
        %v983 = vsub.s32 4, %v982
        %v984 = vrot.slane %v565, %v983
        %v985 = vmul.f32 %v980, %v975
        %v986 = vmul.f32 %v984, %v976
        %v987 = vadd.f32 %v922, %v985
        %v988 = vadd.f32 %v923, %v986
        %v989 = vlaneseq
        %v990 = vshrl.u32 %v989, 7
        %v991 = vsub.s32 5, %v990
        %v992 = vrot.slane %v563, %v991
        %v993 = vlaneseq
        %v994 = vshrl.u32 %v993, 7
        %v995 = vsub.s32 5, %v994
        %v996 = vrot.slane %v565, %v995
        %v997 = vmul.f32 %v992, %v975
        %v998 = vmul.f32 %v996, %v976
        %v999 = vadd.f32 %v934, %v997
        %v1000 = vadd.f32 %v935, %v998
        %v1001 = vlaneseq
        %v1002 = vshrl.u32 %v1001, 7
        %v1003 = vsub.s32 6, %v1002
        %v1004 = vrot.slane %v563, %v1003
        %v1005 = vlaneseq
        %v1006 = vshrl.u32 %v1005, 7
        %v1007 = vsub.s32 6, %v1006
        %v1008 = vrot.slane %v565, %v1007
        %v1009 = vmul.f32 %v1004, %v975
        %v1010 = vmul.f32 %v1008, %v976
        %v1011 = vadd.f32 %v946, %v1009
        %v1012 = vadd.f32 %v947, %v1010
        %v1013 = vlaneseq
        %v1014 = vshrl.u32 %v1013, 7
        %v1015 = vsub.s32 7, %v1014
        %v1016 = vrot.slane %v563, %v1015
        %v1017 = vlaneseq
        %v1018 = vshrl.u32 %v1017, 7
        %v1019 = vsub.s32 7, %v1018
        %v1020 = vrot.slane %v565, %v1019
        %v1021 = vmul.f32 %v1016, %v975
        %v1022 = vmul.f32 %v1020, %v976
        %v1023 = vadd.f32 %v958, %v1021
        %v1024 = vadd.f32 %v959, %v1022
        %1025 = vrot.lane.b32.xlu0 %v629, 17
        %v1026 = vpop.permute.xlu0 %1025
        %1027 = vrot.lane.b32.xlu0 %v630, 17
        %v1028 = vpop.permute.xlu0 %1027
        %vm1029 = vcmp.lt.s32.totalorder %v638, 17
        %v1030 = vsel %vm1029, %v1026, %v1028
        %v1031 = vsel %vm1029, %v1028, %v1026
        %v1032 = vlaneseq
        %v1033 = vshrl.u32 %v1032, 7
        %v1034 = vsub.s32 6, %v1033
        %v1035 = vrot.slane %v619, %v1034
        %v1036 = vlaneseq
        %v1037 = vshrl.u32 %v1036, 7
        %v1038 = vsub.s32 6, %v1037
        %v1039 = vrot.slane %v620, %v1038
        %v1040 = vmul.f32 %v1031, %v1035
        %v1041 = vmul.f32 %v1030, %v1039
        %v1042 = vlaneseq
        %v1043 = vshrl.u32 %v1042, 7
        %v1044 = vsub.s32 0, %v1043
        %v1045 = vrot.slane %v567, %v1044
        %v1046 = vlaneseq
        %v1047 = vshrl.u32 %v1046, 7
        %v1048 = vsub.s32 0, %v1047
        %v1049 = vrot.slane %v569, %v1048
        %v1050 = vmul.f32 %v1045, %v1040
        %v1051 = vmul.f32 %v1049, %v1041
        %v1052 = vadd.f32 %v987, %v1050
        %v1053 = vadd.f32 %v988, %v1051
        %v1054 = vlaneseq
        %v1055 = vshrl.u32 %v1054, 7
        %v1056 = vsub.s32 1, %v1055
        %v1057 = vrot.slane %v567, %v1056
        %v1058 = vlaneseq
        %v1059 = vshrl.u32 %v1058, 7
        %v1060 = vsub.s32 1, %v1059
        %v1061 = vrot.slane %v569, %v1060
        %v1062 = vmul.f32 %v1057, %v1040
        %v1063 = vmul.f32 %v1061, %v1041
        %v1064 = vadd.f32 %v999, %v1062
        %v1065 = vadd.f32 %v1000, %v1063
        %v1066 = vlaneseq
        %v1067 = vshrl.u32 %v1066, 7
        %v1068 = vsub.s32 2, %v1067
        %v1069 = vrot.slane %v567, %v1068
        %v1070 = vlaneseq
        %v1071 = vshrl.u32 %v1070, 7
        %v1072 = vsub.s32 2, %v1071
        %v1073 = vrot.slane %v569, %v1072
        %v1074 = vmul.f32 %v1069, %v1040
        %v1075 = vmul.f32 %v1073, %v1041
        %v1076 = vadd.f32 %v1011, %v1074
        %v1077 = vadd.f32 %v1012, %v1075
        %v1078 = vlaneseq
        %v1079 = vshrl.u32 %v1078, 7
        %v1080 = vsub.s32 3, %v1079
        %v1081 = vrot.slane %v567, %v1080
        %v1082 = vlaneseq
        %v1083 = vshrl.u32 %v1082, 7
        %v1084 = vsub.s32 3, %v1083
        %v1085 = vrot.slane %v569, %v1084
        %v1086 = vmul.f32 %v1081, %v1040
        %v1087 = vmul.f32 %v1085, %v1041
        %v1088 = vadd.f32 %v1023, %v1086
        %v1089 = vadd.f32 %v1024, %v1087
        %1090 = vrot.lane.b32.xlu0 %v629, 16
        %v1091 = vpop.permute.xlu0 %1090
        %1092 = vrot.lane.b32.xlu0 %v630, 16
        %v1093 = vpop.permute.xlu0 %1092
        %vm1094 = vcmp.lt.s32.totalorder %v638, 16
        %v1095 = vsel %vm1094, %v1091, %v1093
        %v1096 = vsel %vm1094, %v1093, %v1091
        %v1097 = vlaneseq
        %v1098 = vshrl.u32 %v1097, 7
        %v1099 = vsub.s32 7, %v1098
        %v1100 = vrot.slane %v619, %v1099
        %v1101 = vlaneseq
        %v1102 = vshrl.u32 %v1101, 7
        %v1103 = vsub.s32 7, %v1102
        %v1104 = vrot.slane %v620, %v1103
        %v1105 = vmul.f32 %v1096, %v1100
        %v1106 = vmul.f32 %v1095, %v1104
        %v1107 = vlaneseq
        %v1108 = vshrl.u32 %v1107, 7
        %v1109 = vsub.s32 4, %v1108
        %v1110 = vrot.slane %v567, %v1109
        %v1111 = vlaneseq
        %v1112 = vshrl.u32 %v1111, 7
        %v1113 = vsub.s32 4, %v1112
        %v1114 = vrot.slane %v569, %v1113
        %v1115 = vmul.f32 %v1110, %v1105
        %v1116 = vmul.f32 %v1114, %v1106
        %v1117 = vadd.f32 %v1052, %v1115
        %v1118 = vadd.f32 %v1053, %v1116
        %v1119 = vlaneseq
        %v1120 = vshrl.u32 %v1119, 7
        %v1121 = vsub.s32 5, %v1120
        %v1122 = vrot.slane %v567, %v1121
        %v1123 = vlaneseq
        %v1124 = vshrl.u32 %v1123, 7
        %v1125 = vsub.s32 5, %v1124
        %v1126 = vrot.slane %v569, %v1125
        %v1127 = vmul.f32 %v1122, %v1105
        %v1128 = vmul.f32 %v1126, %v1106
        %v1129 = vadd.f32 %v1064, %v1127
        %v1130 = vadd.f32 %v1065, %v1128
        %v1131 = vlaneseq
        %v1132 = vshrl.u32 %v1131, 7
        %v1133 = vsub.s32 6, %v1132
        %v1134 = vrot.slane %v567, %v1133
        %v1135 = vlaneseq
        %v1136 = vshrl.u32 %v1135, 7
        %v1137 = vsub.s32 6, %v1136
        %v1138 = vrot.slane %v569, %v1137
        %v1139 = vmul.f32 %v1134, %v1105
        %v1140 = vmul.f32 %v1138, %v1106
        %v1141 = vadd.f32 %v1076, %v1139
        %v1142 = vadd.f32 %v1077, %v1140
        %v1143 = vlaneseq
        %v1144 = vshrl.u32 %v1143, 7
        %v1145 = vsub.s32 7, %v1144
        %v1146 = vrot.slane %v567, %v1145
        %v1147 = vlaneseq
        %v1148 = vshrl.u32 %v1147, 7
        %v1149 = vsub.s32 7, %v1148
        %v1150 = vrot.slane %v569, %v1149
        %v1151 = vmul.f32 %v1146, %v1105
        %v1152 = vmul.f32 %v1150, %v1106
        %v1153 = vadd.f32 %v1088, %v1151
        %v1154 = vadd.f32 %v1089, %v1152
        %1155 = vrot.lane.b32.xlu0 %v629, 15
        %v1156 = vpop.permute.xlu0 %1155
        %1157 = vrot.lane.b32.xlu0 %v630, 15
        %v1158 = vpop.permute.xlu0 %1157
        %vm1159 = vcmp.lt.s32.totalorder %v638, 15
        %v1160 = vsel %vm1159, %v1156, %v1158
        %v1161 = vsel %vm1159, %v1158, %v1156
        %v1162 = vlaneseq
        %v1163 = vshrl.u32 %v1162, 7
        %v1164 = vsub.s32 0, %v1163
        %v1165 = vrot.slane %v621, %v1164
        %v1166 = vlaneseq
        %v1167 = vshrl.u32 %v1166, 7
        %v1168 = vsub.s32 0, %v1167
        %v1169 = vrot.slane %v622, %v1168
        %v1170 = vmul.f32 %v1161, %v1165
        %v1171 = vmul.f32 %v1160, %v1169
        %v1172 = vlaneseq
        %v1173 = vshrl.u32 %v1172, 7
        %v1174 = vsub.s32 0, %v1173
        %v1175 = vrot.slane %v573, %v1174
        %v1176 = vlaneseq
        %v1177 = vshrl.u32 %v1176, 7
        %v1178 = vsub.s32 0, %v1177
        %v1179 = vrot.slane %v575, %v1178
        %v1180 = vmul.f32 %v1175, %v1170
        %v1181 = vmul.f32 %v1179, %v1171
        %v1182 = vadd.f32 %v1117, %v1180
        %v1183 = vadd.f32 %v1118, %v1181
        %v1184 = vlaneseq
        %v1185 = vshrl.u32 %v1184, 7
        %v1186 = vsub.s32 1, %v1185
        %v1187 = vrot.slane %v573, %v1186
        %v1188 = vlaneseq
        %v1189 = vshrl.u32 %v1188, 7
        %v1190 = vsub.s32 1, %v1189
        %v1191 = vrot.slane %v575, %v1190
        %v1192 = vmul.f32 %v1187, %v1170
        %v1193 = vmul.f32 %v1191, %v1171
        %v1194 = vadd.f32 %v1129, %v1192
        %v1195 = vadd.f32 %v1130, %v1193
        %v1196 = vlaneseq
        %v1197 = vshrl.u32 %v1196, 7
        %v1198 = vsub.s32 2, %v1197
        %v1199 = vrot.slane %v573, %v1198
        %v1200 = vlaneseq
        %v1201 = vshrl.u32 %v1200, 7
        %v1202 = vsub.s32 2, %v1201
        %v1203 = vrot.slane %v575, %v1202
        %v1204 = vmul.f32 %v1199, %v1170
        %v1205 = vmul.f32 %v1203, %v1171
        %v1206 = vadd.f32 %v1141, %v1204
        %v1207 = vadd.f32 %v1142, %v1205
        %v1208 = vlaneseq
        %v1209 = vshrl.u32 %v1208, 7
        %v1210 = vsub.s32 3, %v1209
        %v1211 = vrot.slane %v573, %v1210
        %v1212 = vlaneseq
        %v1213 = vshrl.u32 %v1212, 7
        %v1214 = vsub.s32 3, %v1213
        %v1215 = vrot.slane %v575, %v1214
        %v1216 = vmul.f32 %v1211, %v1170
        %v1217 = vmul.f32 %v1215, %v1171
        %v1218 = vadd.f32 %v1153, %v1216
        %v1219 = vadd.f32 %v1154, %v1217
        %1220 = vrot.lane.b32.xlu0 %v629, 14
        %v1221 = vpop.permute.xlu0 %1220
        %1222 = vrot.lane.b32.xlu0 %v630, 14
        %v1223 = vpop.permute.xlu0 %1222
        %vm1224 = vcmp.lt.s32.totalorder %v638, 14
        %v1225 = vsel %vm1224, %v1221, %v1223
        %v1226 = vsel %vm1224, %v1223, %v1221
        %v1227 = vlaneseq
        %v1228 = vshrl.u32 %v1227, 7
        %v1229 = vsub.s32 1, %v1228
        %v1230 = vrot.slane %v621, %v1229
        %v1231 = vlaneseq
        %v1232 = vshrl.u32 %v1231, 7
        %v1233 = vsub.s32 1, %v1232
        %v1234 = vrot.slane %v622, %v1233
        %v1235 = vmul.f32 %v1226, %v1230
        %v1236 = vmul.f32 %v1225, %v1234
        %v1237 = vlaneseq
        %v1238 = vshrl.u32 %v1237, 7
        %v1239 = vsub.s32 4, %v1238
        %v1240 = vrot.slane %v573, %v1239
        %v1241 = vlaneseq
        %v1242 = vshrl.u32 %v1241, 7
        %v1243 = vsub.s32 4, %v1242
        %v1244 = vrot.slane %v575, %v1243
        %v1245 = vmul.f32 %v1240, %v1235
        %v1246 = vmul.f32 %v1244, %v1236
        %v1247 = vadd.f32 %v1182, %v1245
        %v1248 = vadd.f32 %v1183, %v1246
        %v1249 = vlaneseq
        %v1250 = vshrl.u32 %v1249, 7
        %v1251 = vsub.s32 5, %v1250
        %v1252 = vrot.slane %v573, %v1251
        %v1253 = vlaneseq
        %v1254 = vshrl.u32 %v1253, 7
        %v1255 = vsub.s32 5, %v1254
        %v1256 = vrot.slane %v575, %v1255
        %v1257 = vmul.f32 %v1252, %v1235
        %v1258 = vmul.f32 %v1256, %v1236
        %v1259 = vadd.f32 %v1194, %v1257
        %v1260 = vadd.f32 %v1195, %v1258
        %v1261 = vlaneseq
        %v1262 = vshrl.u32 %v1261, 7
        %v1263 = vsub.s32 6, %v1262
        %v1264 = vrot.slane %v573, %v1263
        %v1265 = vlaneseq
        %v1266 = vshrl.u32 %v1265, 7
        %v1267 = vsub.s32 6, %v1266
        %v1268 = vrot.slane %v575, %v1267
        %v1269 = vmul.f32 %v1264, %v1235
        %v1270 = vmul.f32 %v1268, %v1236
        %v1271 = vadd.f32 %v1206, %v1269
        %v1272 = vadd.f32 %v1207, %v1270
        %v1273 = vlaneseq
        %v1274 = vshrl.u32 %v1273, 7
        %v1275 = vsub.s32 7, %v1274
        %v1276 = vrot.slane %v573, %v1275
        %v1277 = vlaneseq
        %v1278 = vshrl.u32 %v1277, 7
        %v1279 = vsub.s32 7, %v1278
        %v1280 = vrot.slane %v575, %v1279
        %v1281 = vmul.f32 %v1276, %v1235
        %v1282 = vmul.f32 %v1280, %v1236
        %v1283 = vadd.f32 %v1218, %v1281
        %v1284 = vadd.f32 %v1219, %v1282
        %1285 = vrot.lane.b32.xlu0 %v629, 2
        %v1286 = vpop.permute.xlu0 %1285
        %1287 = vrot.lane.b32.xlu0 %v630, 2
        %v1288 = vpop.permute.xlu0 %1287
        %vm1289 = vcmp.lt.s32.totalorder %v638, 2
        %v1290 = vsel %vm1289, %v1286, %v1288
        %v1291 = vsel %vm1289, %v1288, %v1286
        %v1292 = vlaneseq
        %v1293 = vshrl.u32 %v1292, 7
        %v1294 = vsub.s32 2, %v1293
        %v1295 = vrot.slane %v621, %v1294
        %v1296 = vlaneseq
        %v1297 = vshrl.u32 %v1296, 7
        %v1298 = vsub.s32 2, %v1297
        %v1299 = vrot.slane %v622, %v1298
        %v1300 = vmul.f32 %v1291, %v1295
        %v1301 = vmul.f32 %v1290, %v1299
        %v1302 = vlaneseq
        %v1303 = vshrl.u32 %v1302, 7
        %v1304 = vsub.s32 0, %v1303
        %v1305 = vrot.slane %v577, %v1304
        %v1306 = vlaneseq
        %v1307 = vshrl.u32 %v1306, 7
        %v1308 = vsub.s32 0, %v1307
        %v1309 = vrot.slane %v579, %v1308
        %v1310 = vmul.f32 %v1305, %v1300
        %v1311 = vmul.f32 %v1309, %v1301
        %v1312 = vadd.f32 %v1247, %v1310
        %v1313 = vadd.f32 %v1248, %v1311
        %v1314 = vlaneseq
        %v1315 = vshrl.u32 %v1314, 7
        %v1316 = vsub.s32 1, %v1315
        %v1317 = vrot.slane %v577, %v1316
        %v1318 = vlaneseq
        %v1319 = vshrl.u32 %v1318, 7
        %v1320 = vsub.s32 1, %v1319
        %v1321 = vrot.slane %v579, %v1320
        %v1322 = vmul.f32 %v1317, %v1300
        %v1323 = vmul.f32 %v1321, %v1301
        %v1324 = vadd.f32 %v1259, %v1322
        %v1325 = vadd.f32 %v1260, %v1323
        %v1326 = vlaneseq
        %v1327 = vshrl.u32 %v1326, 7
        %v1328 = vsub.s32 2, %v1327
        %v1329 = vrot.slane %v577, %v1328
        %v1330 = vlaneseq
        %v1331 = vshrl.u32 %v1330, 7
        %v1332 = vsub.s32 2, %v1331
        %v1333 = vrot.slane %v579, %v1332
        %v1334 = vmul.f32 %v1329, %v1300
        %v1335 = vmul.f32 %v1333, %v1301
        %v1336 = vadd.f32 %v1271, %v1334
        %v1337 = vadd.f32 %v1272, %v1335
        %v1338 = vlaneseq
        %v1339 = vshrl.u32 %v1338, 7
        %v1340 = vsub.s32 3, %v1339
        %v1341 = vrot.slane %v577, %v1340
        %v1342 = vlaneseq
        %v1343 = vshrl.u32 %v1342, 7
        %v1344 = vsub.s32 3, %v1343
        %v1345 = vrot.slane %v579, %v1344
        %v1346 = vmul.f32 %v1341, %v1300
        %v1347 = vmul.f32 %v1345, %v1301
        %v1348 = vadd.f32 %v1283, %v1346
        %v1349 = vadd.f32 %v1284, %v1347
        %1350 = vrot.lane.b32.xlu0 %v629, 1
        %v1351 = vpop.permute.xlu0 %1350
        %1352 = vrot.lane.b32.xlu0 %v630, 1
        %v1353 = vpop.permute.xlu0 %1352
        %vm1354 = vcmp.lt.s32.totalorder %v638, 1
        %v1355 = vsel %vm1354, %v1351, %v1353
        %v1356 = vsel %vm1354, %v1353, %v1351
        %v1357 = vlaneseq
        %v1358 = vshrl.u32 %v1357, 7
        %v1359 = vsub.s32 3, %v1358
        %v1360 = vrot.slane %v621, %v1359
        %v1361 = vlaneseq
        %v1362 = vshrl.u32 %v1361, 7
        %v1363 = vsub.s32 3, %v1362
        %v1364 = vrot.slane %v622, %v1363
        %v1365 = vmul.f32 %v1356, %v1360
        %v1366 = vmul.f32 %v1355, %v1364
        %v1367 = vlaneseq
        %v1368 = vshrl.u32 %v1367, 7
        %v1369 = vsub.s32 4, %v1368
        %v1370 = vrot.slane %v577, %v1369
        %v1371 = vlaneseq
        %v1372 = vshrl.u32 %v1371, 7
        %v1373 = vsub.s32 4, %v1372
        %v1374 = vrot.slane %v579, %v1373
        %v1375 = vmul.f32 %v1370, %v1365
        %v1376 = vmul.f32 %v1374, %v1366
        %v1377 = vadd.f32 %v1312, %v1375
        %v1378 = vadd.f32 %v1313, %v1376
        %v1379 = vlaneseq
        %v1380 = vshrl.u32 %v1379, 7
        %v1381 = vsub.s32 5, %v1380
        %v1382 = vrot.slane %v577, %v1381
        %v1383 = vlaneseq
        %v1384 = vshrl.u32 %v1383, 7
        %v1385 = vsub.s32 5, %v1384
        %v1386 = vrot.slane %v579, %v1385
        %v1387 = vmul.f32 %v1382, %v1365
        %v1388 = vmul.f32 %v1386, %v1366
        %v1389 = vadd.f32 %v1324, %v1387
        %v1390 = vadd.f32 %v1325, %v1388
        %v1391 = vlaneseq
        %v1392 = vshrl.u32 %v1391, 7
        %v1393 = vsub.s32 6, %v1392
        %v1394 = vrot.slane %v577, %v1393
        %v1395 = vlaneseq
        %v1396 = vshrl.u32 %v1395, 7
        %v1397 = vsub.s32 6, %v1396
        %v1398 = vrot.slane %v579, %v1397
        %v1399 = vmul.f32 %v1394, %v1365
        %v1400 = vmul.f32 %v1398, %v1366
        %v1401 = vadd.f32 %v1336, %v1399
        %v1402 = vadd.f32 %v1337, %v1400
        %v1403 = vlaneseq
        %v1404 = vshrl.u32 %v1403, 7
        %v1405 = vsub.s32 7, %v1404
        %v1406 = vrot.slane %v577, %v1405
        %v1407 = vlaneseq
        %v1408 = vshrl.u32 %v1407, 7
        %v1409 = vsub.s32 7, %v1408
        %v1410 = vrot.slane %v579, %v1409
        %v1411 = vmul.f32 %v1406, %v1365
        %v1412 = vmul.f32 %v1410, %v1366
        %v1413 = vadd.f32 %v1348, %v1411
        %v1414 = vadd.f32 %v1349, %v1412
        %v1415 = vlaneseq
        %v1416 = vshrl.u32 %v1415, 7
        %v1417 = vsub.s32 4, %v1416
        %v1418 = vrot.slane %v621, %v1417
        %v1419 = vlaneseq
        %v1420 = vshrl.u32 %v1419, 7
        %v1421 = vsub.s32 4, %v1420
        %v1422 = vrot.slane %v622, %v1421
        %v1423 = vmul.f32 %v318, %v1418
        %v1424 = vmul.f32 %v320, %v1422
        %v1425 = vlaneseq
        %v1426 = vshrl.u32 %v1425, 7
        %v1427 = vsub.s32 0, %v1426
        %v1428 = vrot.slane %v583, %v1427
        %v1429 = vlaneseq
        %v1430 = vshrl.u32 %v1429, 7
        %v1431 = vsub.s32 0, %v1430
        %v1432 = vrot.slane %v585, %v1431
        %v1433 = vmul.f32 %v1428, %v1423
        %v1434 = vmul.f32 %v1432, %v1424
        %v1437 = vrot.slane %v1433, 4
        %v1438 = vrot.slane %v1434, 4
        %v1441 = vadd.f32 %v1377, %v1437
        %v1442 = vadd.f32 %v1378, %v1438
        %v1443 = vlaneseq
        %v1444 = vshrl.u32 %v1443, 7
        %v1445 = vsub.s32 1, %v1444
        %v1446 = vrot.slane %v583, %v1445
        %v1447 = vlaneseq
        %v1448 = vshrl.u32 %v1447, 7
        %v1449 = vsub.s32 1, %v1448
        %v1450 = vrot.slane %v585, %v1449
        %v1451 = vmul.f32 %v1446, %v1423
        %v1452 = vmul.f32 %v1450, %v1424
        %v1455 = vrot.slane %v1451, 4
        %v1456 = vrot.slane %v1452, 4
        %v1459 = vadd.f32 %v1389, %v1455
        %v1460 = vadd.f32 %v1390, %v1456
        %v1461 = vlaneseq
        %v1462 = vshrl.u32 %v1461, 7
        %v1463 = vsub.s32 2, %v1462
        %v1464 = vrot.slane %v583, %v1463
        %v1465 = vlaneseq
        %v1466 = vshrl.u32 %v1465, 7
        %v1467 = vsub.s32 2, %v1466
        %v1468 = vrot.slane %v585, %v1467
        %v1469 = vmul.f32 %v1464, %v1423
        %v1470 = vmul.f32 %v1468, %v1424
        %v1473 = vrot.slane %v1469, 4
        %v1474 = vrot.slane %v1470, 4
        %v1477 = vadd.f32 %v1401, %v1473
        %v1478 = vadd.f32 %v1402, %v1474
        %v1479 = vlaneseq
        %v1480 = vshrl.u32 %v1479, 7
        %v1481 = vsub.s32 3, %v1480
        %v1482 = vrot.slane %v583, %v1481
        %v1483 = vlaneseq
        %v1484 = vshrl.u32 %v1483, 7
        %v1485 = vsub.s32 3, %v1484
        %v1486 = vrot.slane %v585, %v1485
        %v1487 = vmul.f32 %v1482, %v1423
        %v1488 = vmul.f32 %v1486, %v1424
        %v1491 = vrot.slane %v1487, 4
        %v1492 = vrot.slane %v1488, 4
        %v1495 = vadd.f32 %v1413, %v1491
        %v1496 = vadd.f32 %v1414, %v1492
        %1497 = vrot.lane.b32.xlu0 %v629, 127
        %v1498 = vpop.permute.xlu0 %1497
        %1499 = vrot.lane.b32.xlu0 %v630, 127
        %v1500 = vpop.permute.xlu0 %1499
        %vm1501 = vcmp.lt.s32.totalorder %v638, 127
        %v1502 = vsel %vm1501, %v1498, %v1500
        %v1503 = vsel %vm1501, %v1500, %v1498
        %v1504 = vlaneseq
        %v1505 = vshrl.u32 %v1504, 7
        %v1506 = vsub.s32 5, %v1505
        %v1507 = vrot.slane %v621, %v1506
        %v1508 = vlaneseq
        %v1509 = vshrl.u32 %v1508, 7
        %v1510 = vsub.s32 5, %v1509
        %v1511 = vrot.slane %v622, %v1510
        %v1512 = vmul.f32 %v1502, %v1507
        %v1513 = vmul.f32 %v1503, %v1511
        %v1514 = vlaneseq
        %v1515 = vshrl.u32 %v1514, 7
        %v1516 = vsub.s32 4, %v1515
        %v1517 = vrot.slane %v583, %v1516
        %v1518 = vlaneseq
        %v1519 = vshrl.u32 %v1518, 7
        %v1520 = vsub.s32 4, %v1519
        %v1521 = vrot.slane %v585, %v1520
        %v1522 = vmul.f32 %v1517, %v1512
        %v1523 = vmul.f32 %v1521, %v1513
        %v1524 = vadd.f32 %v1441, %v1522
        %v1525 = vadd.f32 %v1442, %v1523
        %v1526 = vlaneseq
        %v1527 = vshrl.u32 %v1526, 7
        %v1528 = vsub.s32 5, %v1527
        %v1529 = vrot.slane %v583, %v1528
        %v1530 = vlaneseq
        %v1531 = vshrl.u32 %v1530, 7
        %v1532 = vsub.s32 5, %v1531
        %v1533 = vrot.slane %v585, %v1532
        %v1534 = vmul.f32 %v1529, %v1512
        %v1535 = vmul.f32 %v1533, %v1513
        %v1536 = vadd.f32 %v1459, %v1534
        %v1537 = vadd.f32 %v1460, %v1535
        %v1538 = vlaneseq
        %v1539 = vshrl.u32 %v1538, 7
        %v1540 = vsub.s32 6, %v1539
        %v1541 = vrot.slane %v583, %v1540
        %v1542 = vlaneseq
        %v1543 = vshrl.u32 %v1542, 7
        %v1544 = vsub.s32 6, %v1543
        %v1545 = vrot.slane %v585, %v1544
        %v1546 = vmul.f32 %v1541, %v1512
        %v1547 = vmul.f32 %v1545, %v1513
        %v1548 = vadd.f32 %v1477, %v1546
        %v1549 = vadd.f32 %v1478, %v1547
        %v1550 = vlaneseq
        %v1551 = vshrl.u32 %v1550, 7
        %v1552 = vsub.s32 7, %v1551
        %v1553 = vrot.slane %v583, %v1552
        %v1554 = vlaneseq
        %v1555 = vshrl.u32 %v1554, 7
        %v1556 = vsub.s32 7, %v1555
        %v1557 = vrot.slane %v585, %v1556
        %v1558 = vmul.f32 %v1553, %v1512
        %v1559 = vmul.f32 %v1557, %v1513
        %v1560 = vadd.f32 %v1495, %v1558
        %v1561 = vadd.f32 %v1496, %v1559
        %1562 = vrot.lane.b32.xlu0 %v629, 126
        %v1563 = vpop.permute.xlu0 %1562
        %1564 = vrot.lane.b32.xlu0 %v630, 126
        %v1565 = vpop.permute.xlu0 %1564
        %vm1566 = vcmp.lt.s32.totalorder %v638, 126
        %v1567 = vsel %vm1566, %v1563, %v1565
        %v1568 = vsel %vm1566, %v1565, %v1563
        %v1569 = vlaneseq
        %v1570 = vshrl.u32 %v1569, 7
        %v1571 = vsub.s32 6, %v1570
        %v1572 = vrot.slane %v621, %v1571
        %v1573 = vlaneseq
        %v1574 = vshrl.u32 %v1573, 7
        %v1575 = vsub.s32 6, %v1574
        %v1576 = vrot.slane %v622, %v1575
        %v1577 = vmul.f32 %v1567, %v1572
        %v1578 = vmul.f32 %v1568, %v1576
        %v1579 = vlaneseq
        %v1580 = vshrl.u32 %v1579, 7
        %v1581 = vsub.s32 0, %v1580
        %v1582 = vrot.slane %v587, %v1581
        %v1583 = vlaneseq
        %v1584 = vshrl.u32 %v1583, 7
        %v1585 = vsub.s32 0, %v1584
        %v1586 = vrot.slane %v589, %v1585
        %v1587 = vmul.f32 %v1582, %v1577
        %v1588 = vmul.f32 %v1586, %v1578
        %v1589 = vadd.f32 %v1524, %v1587
        %v1590 = vadd.f32 %v1525, %v1588
        %v1591 = vlaneseq
        %v1592 = vshrl.u32 %v1591, 7
        %v1593 = vsub.s32 1, %v1592
        %v1594 = vrot.slane %v587, %v1593
        %v1595 = vlaneseq
        %v1596 = vshrl.u32 %v1595, 7
        %v1597 = vsub.s32 1, %v1596
        %v1598 = vrot.slane %v589, %v1597
        %v1599 = vmul.f32 %v1594, %v1577
        %v1600 = vmul.f32 %v1598, %v1578
        %v1601 = vadd.f32 %v1536, %v1599
        %v1602 = vadd.f32 %v1537, %v1600
        %v1603 = vlaneseq
        %v1604 = vshrl.u32 %v1603, 7
        %v1605 = vsub.s32 2, %v1604
        %v1606 = vrot.slane %v587, %v1605
        %v1607 = vlaneseq
        %v1608 = vshrl.u32 %v1607, 7
        %v1609 = vsub.s32 2, %v1608
        %v1610 = vrot.slane %v589, %v1609
        %v1611 = vmul.f32 %v1606, %v1577
        %v1612 = vmul.f32 %v1610, %v1578
        %v1613 = vadd.f32 %v1548, %v1611
        %v1614 = vadd.f32 %v1549, %v1612
        %v1615 = vlaneseq
        %v1616 = vshrl.u32 %v1615, 7
        %v1617 = vsub.s32 3, %v1616
        %v1618 = vrot.slane %v587, %v1617
        %v1619 = vlaneseq
        %v1620 = vshrl.u32 %v1619, 7
        %v1621 = vsub.s32 3, %v1620
        %v1622 = vrot.slane %v589, %v1621
        %v1623 = vmul.f32 %v1618, %v1577
        %v1624 = vmul.f32 %v1622, %v1578
        %v1625 = vadd.f32 %v1560, %v1623
        %v1626 = vadd.f32 %v1561, %v1624
        %1627 = vrot.lane.b32.xlu0 %v629, 114
        %v1628 = vpop.permute.xlu0 %1627
        %1629 = vrot.lane.b32.xlu0 %v630, 114
        %v1630 = vpop.permute.xlu0 %1629
        %vm1631 = vcmp.lt.s32.totalorder %v638, 114
        %v1632 = vsel %vm1631, %v1628, %v1630
        %v1633 = vsel %vm1631, %v1630, %v1628
        %v1634 = vlaneseq
        %v1635 = vshrl.u32 %v1634, 7
        %v1636 = vsub.s32 7, %v1635
        %v1637 = vrot.slane %v621, %v1636
        %v1638 = vlaneseq
        %v1639 = vshrl.u32 %v1638, 7
        %v1640 = vsub.s32 7, %v1639
        %v1641 = vrot.slane %v622, %v1640
        %v1642 = vmul.f32 %v1632, %v1637
        %v1643 = vmul.f32 %v1633, %v1641
        %v1644 = vlaneseq
        %v1645 = vshrl.u32 %v1644, 7
        %v1646 = vsub.s32 4, %v1645
        %v1647 = vrot.slane %v587, %v1646
        %v1648 = vlaneseq
        %v1649 = vshrl.u32 %v1648, 7
        %v1650 = vsub.s32 4, %v1649
        %v1651 = vrot.slane %v589, %v1650
        %v1652 = vmul.f32 %v1647, %v1642
        %v1653 = vmul.f32 %v1651, %v1643
        %v1654 = vadd.f32 %v1589, %v1652
        %v1655 = vadd.f32 %v1590, %v1653
        %v1656 = vlaneseq
        %v1657 = vshrl.u32 %v1656, 7
        %v1658 = vsub.s32 5, %v1657
        %v1659 = vrot.slane %v587, %v1658
        %v1660 = vlaneseq
        %v1661 = vshrl.u32 %v1660, 7
        %v1662 = vsub.s32 5, %v1661
        %v1663 = vrot.slane %v589, %v1662
        %v1664 = vmul.f32 %v1659, %v1642
        %v1665 = vmul.f32 %v1663, %v1643
        %v1666 = vadd.f32 %v1601, %v1664
        %v1667 = vadd.f32 %v1602, %v1665
        %v1668 = vlaneseq
        %v1669 = vshrl.u32 %v1668, 7
        %v1670 = vsub.s32 6, %v1669
        %v1671 = vrot.slane %v587, %v1670
        %v1672 = vlaneseq
        %v1673 = vshrl.u32 %v1672, 7
        %v1674 = vsub.s32 6, %v1673
        %v1675 = vrot.slane %v589, %v1674
        %v1676 = vmul.f32 %v1671, %v1642
        %v1677 = vmul.f32 %v1675, %v1643
        %v1678 = vadd.f32 %v1613, %v1676
        %v1679 = vadd.f32 %v1614, %v1677
        %v1680 = vlaneseq
        %v1681 = vshrl.u32 %v1680, 7
        %v1682 = vsub.s32 7, %v1681
        %v1683 = vrot.slane %v587, %v1682
        %v1684 = vlaneseq
        %v1685 = vshrl.u32 %v1684, 7
        %v1686 = vsub.s32 7, %v1685
        %v1687 = vrot.slane %v589, %v1686
        %v1688 = vmul.f32 %v1683, %v1642
        %v1689 = vmul.f32 %v1687, %v1643
        %v1690 = vadd.f32 %v1625, %v1688
        %v1691 = vadd.f32 %v1626, %v1689
        %1692 = vrot.lane.b32.xlu0 %v629, 113
        %v1693 = vpop.permute.xlu0 %1692
        %1694 = vrot.lane.b32.xlu0 %v630, 113
        %v1695 = vpop.permute.xlu0 %1694
        %vm1696 = vcmp.lt.s32.totalorder %v638, 113
        %v1697 = vsel %vm1696, %v1693, %v1695
        %v1698 = vsel %vm1696, %v1695, %v1693
        %v1699 = vlaneseq
        %v1700 = vshrl.u32 %v1699, 7
        %v1701 = vsub.s32 0, %v1700
        %v1702 = vrot.slane %v623, %v1701
        %v1703 = vlaneseq
        %v1704 = vshrl.u32 %v1703, 7
        %v1705 = vsub.s32 0, %v1704
        %v1706 = vrot.slane %v624, %v1705
        %v1707 = vmul.f32 %v1697, %v1702
        %v1708 = vmul.f32 %v1698, %v1706
        %v1709 = vlaneseq
        %v1710 = vshrl.u32 %v1709, 7
        %v1711 = vsub.s32 0, %v1710
        %v1712 = vrot.slane %v593, %v1711
        %v1713 = vlaneseq
        %v1714 = vshrl.u32 %v1713, 7
        %v1715 = vsub.s32 0, %v1714
        %v1716 = vrot.slane %v595, %v1715
        %v1717 = vmul.f32 %v1712, %v1707
        %v1718 = vmul.f32 %v1716, %v1708
        %v1719 = vadd.f32 %v1654, %v1717
        %v1720 = vadd.f32 %v1655, %v1718
        %v1721 = vlaneseq
        %v1722 = vshrl.u32 %v1721, 7
        %v1723 = vsub.s32 1, %v1722
        %v1724 = vrot.slane %v593, %v1723
        %v1725 = vlaneseq
        %v1726 = vshrl.u32 %v1725, 7
        %v1727 = vsub.s32 1, %v1726
        %v1728 = vrot.slane %v595, %v1727
        %v1729 = vmul.f32 %v1724, %v1707
        %v1730 = vmul.f32 %v1728, %v1708
        %v1731 = vadd.f32 %v1666, %v1729
        %v1732 = vadd.f32 %v1667, %v1730
        %v1733 = vlaneseq
        %v1734 = vshrl.u32 %v1733, 7
        %v1735 = vsub.s32 2, %v1734
        %v1736 = vrot.slane %v593, %v1735
        %v1737 = vlaneseq
        %v1738 = vshrl.u32 %v1737, 7
        %v1739 = vsub.s32 2, %v1738
        %v1740 = vrot.slane %v595, %v1739
        %v1741 = vmul.f32 %v1736, %v1707
        %v1742 = vmul.f32 %v1740, %v1708
        %v1743 = vadd.f32 %v1678, %v1741
        %v1744 = vadd.f32 %v1679, %v1742
        %v1745 = vlaneseq
        %v1746 = vshrl.u32 %v1745, 7
        %v1747 = vsub.s32 3, %v1746
        %v1748 = vrot.slane %v593, %v1747
        %v1749 = vlaneseq
        %v1750 = vshrl.u32 %v1749, 7
        %v1751 = vsub.s32 3, %v1750
        %v1752 = vrot.slane %v595, %v1751
        %v1753 = vmul.f32 %v1748, %v1707
        %v1754 = vmul.f32 %v1752, %v1708
        %v1755 = vadd.f32 %v1690, %v1753
        %v1756 = vadd.f32 %v1691, %v1754
        %1757 = vrot.lane.b32.xlu0 %v629, 112
        %v1758 = vpop.permute.xlu0 %1757
        %1759 = vrot.lane.b32.xlu0 %v630, 112
        %v1760 = vpop.permute.xlu0 %1759
        %vm1761 = vcmp.lt.s32.totalorder %v638, 112
        %v1762 = vsel %vm1761, %v1758, %v1760
        %v1763 = vsel %vm1761, %v1760, %v1758
        %v1764 = vlaneseq
        %v1765 = vshrl.u32 %v1764, 7
        %v1766 = vsub.s32 1, %v1765
        %v1767 = vrot.slane %v623, %v1766
        %v1768 = vlaneseq
        %v1769 = vshrl.u32 %v1768, 7
        %v1770 = vsub.s32 1, %v1769
        %v1771 = vrot.slane %v624, %v1770
        %v1772 = vmul.f32 %v1762, %v1767
        %v1773 = vmul.f32 %v1763, %v1771
        %v1774 = vlaneseq
        %v1775 = vshrl.u32 %v1774, 7
        %v1776 = vsub.s32 4, %v1775
        %v1777 = vrot.slane %v593, %v1776
        %v1778 = vlaneseq
        %v1779 = vshrl.u32 %v1778, 7
        %v1780 = vsub.s32 4, %v1779
        %v1781 = vrot.slane %v595, %v1780
        %v1782 = vmul.f32 %v1777, %v1772
        %v1783 = vmul.f32 %v1781, %v1773
        %v1784 = vadd.f32 %v1719, %v1782
        %v1785 = vadd.f32 %v1720, %v1783
        %v1786 = vlaneseq
        %v1787 = vshrl.u32 %v1786, 7
        %v1788 = vsub.s32 5, %v1787
        %v1789 = vrot.slane %v593, %v1788
        %v1790 = vlaneseq
        %v1791 = vshrl.u32 %v1790, 7
        %v1792 = vsub.s32 5, %v1791
        %v1793 = vrot.slane %v595, %v1792
        %v1794 = vmul.f32 %v1789, %v1772
        %v1795 = vmul.f32 %v1793, %v1773
        %v1796 = vadd.f32 %v1731, %v1794
        %v1797 = vadd.f32 %v1732, %v1795
        %v1798 = vlaneseq
        %v1799 = vshrl.u32 %v1798, 7
        %v1800 = vsub.s32 6, %v1799
        %v1801 = vrot.slane %v593, %v1800
        %v1802 = vlaneseq
        %v1803 = vshrl.u32 %v1802, 7
        %v1804 = vsub.s32 6, %v1803
        %v1805 = vrot.slane %v595, %v1804
        %v1806 = vmul.f32 %v1801, %v1772
        %v1807 = vmul.f32 %v1805, %v1773
        %v1808 = vadd.f32 %v1743, %v1806
        %v1809 = vadd.f32 %v1744, %v1807
        %v1810 = vlaneseq
        %v1811 = vshrl.u32 %v1810, 7
        %v1812 = vsub.s32 7, %v1811
        %v1813 = vrot.slane %v593, %v1812
        %v1814 = vlaneseq
        %v1815 = vshrl.u32 %v1814, 7
        %v1816 = vsub.s32 7, %v1815
        %v1817 = vrot.slane %v595, %v1816
        %v1818 = vmul.f32 %v1813, %v1772
        %v1819 = vmul.f32 %v1817, %v1773
        %v1820 = vadd.f32 %v1755, %v1818
        %v1821 = vadd.f32 %v1756, %v1819
        %1822 = vrot.lane.b32.xlu0 %v629, 111
        %v1823 = vpop.permute.xlu0 %1822
        %1824 = vrot.lane.b32.xlu0 %v630, 111
        %v1825 = vpop.permute.xlu0 %1824
        %vm1826 = vcmp.lt.s32.totalorder %v638, 111
        %v1827 = vsel %vm1826, %v1823, %v1825
        %v1828 = vsel %vm1826, %v1825, %v1823
        %v1829 = vlaneseq
        %v1830 = vshrl.u32 %v1829, 7
        %v1831 = vsub.s32 2, %v1830
        %v1832 = vrot.slane %v623, %v1831
        %v1833 = vlaneseq
        %v1834 = vshrl.u32 %v1833, 7
        %v1835 = vsub.s32 2, %v1834
        %v1836 = vrot.slane %v624, %v1835
        %v1837 = vmul.f32 %v1827, %v1832
        %v1838 = vmul.f32 %v1828, %v1836
        %v1839 = vlaneseq
        %v1840 = vshrl.u32 %v1839, 7
        %v1841 = vsub.s32 0, %v1840
        %v1842 = vrot.slane %v597, %v1841
        %v1843 = vlaneseq
        %v1844 = vshrl.u32 %v1843, 7
        %v1845 = vsub.s32 0, %v1844
        %v1846 = vrot.slane %v599, %v1845
        %v1847 = vmul.f32 %v1842, %v1837
        %v1848 = vmul.f32 %v1846, %v1838
        %v1849 = vadd.f32 %v1784, %v1847
        %v1850 = vadd.f32 %v1785, %v1848
        %v1851 = vlaneseq
        %v1852 = vshrl.u32 %v1851, 7
        %v1853 = vsub.s32 1, %v1852
        %v1854 = vrot.slane %v597, %v1853
        %v1855 = vlaneseq
        %v1856 = vshrl.u32 %v1855, 7
        %v1857 = vsub.s32 1, %v1856
        %v1858 = vrot.slane %v599, %v1857
        %v1859 = vmul.f32 %v1854, %v1837
        %v1860 = vmul.f32 %v1858, %v1838
        %v1861 = vadd.f32 %v1796, %v1859
        %v1862 = vadd.f32 %v1797, %v1860
        %v1863 = vlaneseq
        %v1864 = vshrl.u32 %v1863, 7
        %v1865 = vsub.s32 2, %v1864
        %v1866 = vrot.slane %v597, %v1865
        %v1867 = vlaneseq
        %v1868 = vshrl.u32 %v1867, 7
        %v1869 = vsub.s32 2, %v1868
        %v1870 = vrot.slane %v599, %v1869
        %v1871 = vmul.f32 %v1866, %v1837
        %v1872 = vmul.f32 %v1870, %v1838
        %v1873 = vadd.f32 %v1808, %v1871
        %v1874 = vadd.f32 %v1809, %v1872
        %v1875 = vlaneseq
        %v1876 = vshrl.u32 %v1875, 7
        %v1877 = vsub.s32 3, %v1876
        %v1878 = vrot.slane %v597, %v1877
        %v1879 = vlaneseq
        %v1880 = vshrl.u32 %v1879, 7
        %v1881 = vsub.s32 3, %v1880
        %v1882 = vrot.slane %v599, %v1881
        %v1883 = vmul.f32 %v1878, %v1837
        %v1884 = vmul.f32 %v1882, %v1838
        %v1885 = vadd.f32 %v1820, %v1883
        %v1886 = vadd.f32 %v1821, %v1884
        %1887 = vrot.lane.b32.xlu0 %v629, 110
        %v1888 = vpop.permute.xlu0 %1887
        %1889 = vrot.lane.b32.xlu0 %v630, 110
        %v1890 = vpop.permute.xlu0 %1889
        %vm1891 = vcmp.lt.s32.totalorder %v638, 110
        %v1892 = vsel %vm1891, %v1888, %v1890
        %v1893 = vsel %vm1891, %v1890, %v1888
        %v1894 = vlaneseq
        %v1895 = vshrl.u32 %v1894, 7
        %v1896 = vsub.s32 3, %v1895
        %v1897 = vrot.slane %v623, %v1896
        %v1898 = vlaneseq
        %v1899 = vshrl.u32 %v1898, 7
        %v1900 = vsub.s32 3, %v1899
        %v1901 = vrot.slane %v624, %v1900
        %v1902 = vmul.f32 %v1892, %v1897
        %v1903 = vmul.f32 %v1893, %v1901
        %v1904 = vlaneseq
        %v1905 = vshrl.u32 %v1904, 7
        %v1906 = vsub.s32 4, %v1905
        %v1907 = vrot.slane %v597, %v1906
        %v1908 = vlaneseq
        %v1909 = vshrl.u32 %v1908, 7
        %v1910 = vsub.s32 4, %v1909
        %v1911 = vrot.slane %v599, %v1910
        %v1912 = vmul.f32 %v1907, %v1902
        %v1913 = vmul.f32 %v1911, %v1903
        %v1914 = vadd.f32 %v1849, %v1912
        %v1915 = vadd.f32 %v1850, %v1913
        %v1916 = vlaneseq
        %v1917 = vshrl.u32 %v1916, 7
        %v1918 = vsub.s32 5, %v1917
        %v1919 = vrot.slane %v597, %v1918
        %v1920 = vlaneseq
        %v1921 = vshrl.u32 %v1920, 7
        %v1922 = vsub.s32 5, %v1921
        %v1923 = vrot.slane %v599, %v1922
        %v1924 = vmul.f32 %v1919, %v1902
        %v1925 = vmul.f32 %v1923, %v1903
        %v1926 = vadd.f32 %v1861, %v1924
        %v1927 = vadd.f32 %v1862, %v1925
        %v1928 = vlaneseq
        %v1929 = vshrl.u32 %v1928, 7
        %v1930 = vsub.s32 6, %v1929
        %v1931 = vrot.slane %v597, %v1930
        %v1932 = vlaneseq
        %v1933 = vshrl.u32 %v1932, 7
        %v1934 = vsub.s32 6, %v1933
        %v1935 = vrot.slane %v599, %v1934
        %v1936 = vmul.f32 %v1931, %v1902
        %v1937 = vmul.f32 %v1935, %v1903
        %v1938 = vadd.f32 %v1873, %v1936
        %v1939 = vadd.f32 %v1874, %v1937
        %v1940 = vlaneseq
        %v1941 = vshrl.u32 %v1940, 7
        %v1942 = vsub.s32 7, %v1941
        %v1943 = vrot.slane %v597, %v1942
        %v1944 = vlaneseq
        %v1945 = vshrl.u32 %v1944, 7
        %v1946 = vsub.s32 7, %v1945
        %v1947 = vrot.slane %v599, %v1946
        %v1948 = vmul.f32 %v1943, %v1902
        %v1949 = vmul.f32 %v1947, %v1903
        %v1950 = vadd.f32 %v1885, %v1948
        %v1951 = vadd.f32 %v1886, %v1949
        %1952 = vrot.lane.b32.xlu0 %v629, 98
        %v1953 = vpop.permute.xlu0 %1952
        %1954 = vrot.lane.b32.xlu0 %v630, 98
        %v1955 = vpop.permute.xlu0 %1954
        %vm1956 = vcmp.lt.s32.totalorder %v638, 98
        %v1957 = vsel %vm1956, %v1953, %v1955
        %v1958 = vsel %vm1956, %v1955, %v1953
        %v1959 = vlaneseq
        %v1960 = vshrl.u32 %v1959, 7
        %v1961 = vsub.s32 4, %v1960
        %v1962 = vrot.slane %v623, %v1961
        %v1963 = vlaneseq
        %v1964 = vshrl.u32 %v1963, 7
        %v1965 = vsub.s32 4, %v1964
        %v1966 = vrot.slane %v624, %v1965
        %v1967 = vmul.f32 %v1957, %v1962
        %v1968 = vmul.f32 %v1958, %v1966
        %v1969 = vlaneseq
        %v1970 = vshrl.u32 %v1969, 7
        %v1971 = vsub.s32 0, %v1970
        %v1972 = vrot.slane %v603, %v1971
        %v1973 = vlaneseq
        %v1974 = vshrl.u32 %v1973, 7
        %v1975 = vsub.s32 0, %v1974
        %v1976 = vrot.slane %v605, %v1975
        %v1977 = vmul.f32 %v1972, %v1967
        %v1978 = vmul.f32 %v1976, %v1968
        %v1979 = vadd.f32 %v1914, %v1977
        %v1980 = vadd.f32 %v1915, %v1978
        %v1981 = vlaneseq
        %v1982 = vshrl.u32 %v1981, 7
        %v1983 = vsub.s32 1, %v1982
        %v1984 = vrot.slane %v603, %v1983
        %v1985 = vlaneseq
        %v1986 = vshrl.u32 %v1985, 7
        %v1987 = vsub.s32 1, %v1986
        %v1988 = vrot.slane %v605, %v1987
        %v1989 = vmul.f32 %v1984, %v1967
        %v1990 = vmul.f32 %v1988, %v1968
        %v1991 = vadd.f32 %v1926, %v1989
        %v1992 = vadd.f32 %v1927, %v1990
        %v1993 = vlaneseq
        %v1994 = vshrl.u32 %v1993, 7
        %v1995 = vsub.s32 2, %v1994
        %v1996 = vrot.slane %v603, %v1995
        %v1997 = vlaneseq
        %v1998 = vshrl.u32 %v1997, 7
        %v1999 = vsub.s32 2, %v1998
        %v2000 = vrot.slane %v605, %v1999
        %v2001 = vmul.f32 %v1996, %v1967
        %v2002 = vmul.f32 %v2000, %v1968
        %v2003 = vadd.f32 %v1938, %v2001
        %v2004 = vadd.f32 %v1939, %v2002
        %v2005 = vlaneseq
        %v2006 = vshrl.u32 %v2005, 7
        %v2007 = vsub.s32 3, %v2006
        %v2008 = vrot.slane %v603, %v2007
        %v2009 = vlaneseq
        %v2010 = vshrl.u32 %v2009, 7
        %v2011 = vsub.s32 3, %v2010
        %v2012 = vrot.slane %v605, %v2011
        %v2013 = vmul.f32 %v2008, %v1967
        %v2014 = vmul.f32 %v2012, %v1968
        %v2015 = vadd.f32 %v1950, %v2013
        %v2016 = vadd.f32 %v1951, %v2014
        %2017 = vrot.lane.b32.xlu0 %v629, 97
        %v2018 = vpop.permute.xlu0 %2017
        %2019 = vrot.lane.b32.xlu0 %v630, 97
        %v2020 = vpop.permute.xlu0 %2019
        %vm2021 = vcmp.lt.s32.totalorder %v638, 97
        %v2022 = vsel %vm2021, %v2018, %v2020
        %v2023 = vsel %vm2021, %v2020, %v2018
        %v2024 = vlaneseq
        %v2025 = vshrl.u32 %v2024, 7
        %v2026 = vsub.s32 5, %v2025
        %v2027 = vrot.slane %v623, %v2026
        %v2028 = vlaneseq
        %v2029 = vshrl.u32 %v2028, 7
        %v2030 = vsub.s32 5, %v2029
        %v2031 = vrot.slane %v624, %v2030
        %v2032 = vmul.f32 %v2022, %v2027
        %v2033 = vmul.f32 %v2023, %v2031
        %v2034 = vlaneseq
        %v2035 = vshrl.u32 %v2034, 7
        %v2036 = vsub.s32 4, %v2035
        %v2037 = vrot.slane %v603, %v2036
        %v2038 = vlaneseq
        %v2039 = vshrl.u32 %v2038, 7
        %v2040 = vsub.s32 4, %v2039
        %v2041 = vrot.slane %v605, %v2040
        %v2042 = vmul.f32 %v2037, %v2032
        %v2043 = vmul.f32 %v2041, %v2033
        %v2044 = vadd.f32 %v1979, %v2042
        %v2045 = vadd.f32 %v1980, %v2043
        %v2046 = vlaneseq
        %v2047 = vshrl.u32 %v2046, 7
        %v2048 = vsub.s32 5, %v2047
        %v2049 = vrot.slane %v603, %v2048
        %v2050 = vlaneseq
        %v2051 = vshrl.u32 %v2050, 7
        %v2052 = vsub.s32 5, %v2051
        %v2053 = vrot.slane %v605, %v2052
        %v2054 = vmul.f32 %v2049, %v2032
        %v2055 = vmul.f32 %v2053, %v2033
        %v2056 = vadd.f32 %v1991, %v2054
        %v2057 = vadd.f32 %v1992, %v2055
        %v2058 = vlaneseq
        %v2059 = vshrl.u32 %v2058, 7
        %v2060 = vsub.s32 6, %v2059
        %v2061 = vrot.slane %v603, %v2060
        %v2062 = vlaneseq
        %v2063 = vshrl.u32 %v2062, 7
        %v2064 = vsub.s32 6, %v2063
        %v2065 = vrot.slane %v605, %v2064
        %v2066 = vmul.f32 %v2061, %v2032
        %v2067 = vmul.f32 %v2065, %v2033
        %v2068 = vadd.f32 %v2003, %v2066
        %v2069 = vadd.f32 %v2004, %v2067
        %v2070 = vlaneseq
        %v2071 = vshrl.u32 %v2070, 7
        %v2072 = vsub.s32 7, %v2071
        %v2073 = vrot.slane %v603, %v2072
        %v2074 = vlaneseq
        %v2075 = vshrl.u32 %v2074, 7
        %v2076 = vsub.s32 7, %v2075
        %v2077 = vrot.slane %v605, %v2076
        %v2078 = vmul.f32 %v2073, %v2032
        %v2079 = vmul.f32 %v2077, %v2033
        %v2080 = vadd.f32 %v2015, %v2078
        %v2081 = vadd.f32 %v2016, %v2079
        %2082 = vrot.lane.b32.xlu0 %v629, 96
        %v2083 = vpop.permute.xlu0 %2082
        %2084 = vrot.lane.b32.xlu0 %v630, 96
        %v2085 = vpop.permute.xlu0 %2084
        %vm2086 = vcmp.lt.s32.totalorder %v638, 96
        %v2087 = vsel %vm2086, %v2083, %v2085
        %v2088 = vsel %vm2086, %v2085, %v2083
        %v2089 = vlaneseq
        %v2090 = vshrl.u32 %v2089, 7
        %v2091 = vsub.s32 6, %v2090
        %v2092 = vrot.slane %v623, %v2091
        %v2093 = vlaneseq
        %v2094 = vshrl.u32 %v2093, 7
        %v2095 = vsub.s32 6, %v2094
        %v2096 = vrot.slane %v624, %v2095
        %v2097 = vmul.f32 %v2087, %v2092
        %v2098 = vmul.f32 %v2088, %v2096
        %v2099 = vlaneseq
        %v2100 = vshrl.u32 %v2099, 7
        %v2101 = vsub.s32 0, %v2100
        %v2102 = vrot.slane %v607, %v2101
        %v2103 = vlaneseq
        %v2104 = vshrl.u32 %v2103, 7
        %v2105 = vsub.s32 0, %v2104
        %v2106 = vrot.slane %v609, %v2105
        %v2107 = vmul.f32 %v2102, %v2097
        %v2108 = vmul.f32 %v2106, %v2098
        %v2109 = vadd.f32 %v2044, %v2107
        %v2110 = vadd.f32 %v2045, %v2108
        %v2111 = vlaneseq
        %v2112 = vshrl.u32 %v2111, 7
        %v2113 = vsub.s32 1, %v2112
        %v2114 = vrot.slane %v607, %v2113
        %v2115 = vlaneseq
        %v2116 = vshrl.u32 %v2115, 7
        %v2117 = vsub.s32 1, %v2116
        %v2118 = vrot.slane %v609, %v2117
        %v2119 = vmul.f32 %v2114, %v2097
        %v2120 = vmul.f32 %v2118, %v2098
        %v2121 = vadd.f32 %v2056, %v2119
        %v2122 = vadd.f32 %v2057, %v2120
        %v2123 = vlaneseq
        %v2124 = vshrl.u32 %v2123, 7
        %v2125 = vsub.s32 2, %v2124
        %v2126 = vrot.slane %v607, %v2125
        %v2127 = vlaneseq
        %v2128 = vshrl.u32 %v2127, 7
        %v2129 = vsub.s32 2, %v2128
        %v2130 = vrot.slane %v609, %v2129
        %v2131 = vmul.f32 %v2126, %v2097
        %v2132 = vmul.f32 %v2130, %v2098
        %v2133 = vadd.f32 %v2068, %v2131
        %v2134 = vadd.f32 %v2069, %v2132
        %v2135 = vlaneseq
        %v2136 = vshrl.u32 %v2135, 7
        %v2137 = vsub.s32 3, %v2136
        %v2138 = vrot.slane %v607, %v2137
        %v2139 = vlaneseq
        %v2140 = vshrl.u32 %v2139, 7
        %v2141 = vsub.s32 3, %v2140
        %v2142 = vrot.slane %v609, %v2141
        %v2143 = vmul.f32 %v2138, %v2097
        %v2144 = vmul.f32 %v2142, %v2098
        %v2145 = vadd.f32 %v2080, %v2143
        %v2146 = vadd.f32 %v2081, %v2144
        %2147 = vrot.lane.b32.xlu0 %v629, 95
        %v2148 = vpop.permute.xlu0 %2147
        %2149 = vrot.lane.b32.xlu0 %v630, 95
        %v2150 = vpop.permute.xlu0 %2149
        %vm2151 = vcmp.lt.s32.totalorder %v638, 95
        %v2152 = vsel %vm2151, %v2148, %v2150
        %v2153 = vsel %vm2151, %v2150, %v2148
        %v2154 = vlaneseq
        %v2155 = vshrl.u32 %v2154, 7
        %v2156 = vsub.s32 7, %v2155
        %v2157 = vrot.slane %v623, %v2156
        %v2158 = vlaneseq
        %v2159 = vshrl.u32 %v2158, 7
        %v2160 = vsub.s32 7, %v2159
        %v2161 = vrot.slane %v624, %v2160
        %v2162 = vmul.f32 %v2152, %v2157
        %v2163 = vmul.f32 %v2153, %v2161
        %v2164 = vlaneseq
        %v2165 = vshrl.u32 %v2164, 7
        %v2166 = vsub.s32 4, %v2165
        %v2167 = vrot.slane %v607, %v2166
        %v2168 = vlaneseq
        %v2169 = vshrl.u32 %v2168, 7
        %v2170 = vsub.s32 4, %v2169
        %v2171 = vrot.slane %v609, %v2170
        %v2172 = vmul.f32 %v2167, %v2162
        %v2173 = vmul.f32 %v2171, %v2163
        %v2174 = vadd.f32 %v2109, %v2172
        %v2175 = vadd.f32 %v2110, %v2173
        %v2176 = vlaneseq
        %v2177 = vshrl.u32 %v2176, 7
        %v2178 = vsub.s32 5, %v2177
        %v2179 = vrot.slane %v607, %v2178
        %v2180 = vlaneseq
        %v2181 = vshrl.u32 %v2180, 7
        %v2182 = vsub.s32 5, %v2181
        %v2183 = vrot.slane %v609, %v2182
        %v2184 = vmul.f32 %v2179, %v2162
        %v2185 = vmul.f32 %v2183, %v2163
        %v2186 = vadd.f32 %v2121, %v2184
        %v2187 = vadd.f32 %v2122, %v2185
        %v2188 = vlaneseq
        %v2189 = vshrl.u32 %v2188, 7
        %v2190 = vsub.s32 6, %v2189
        %v2191 = vrot.slane %v607, %v2190
        %v2192 = vlaneseq
        %v2193 = vshrl.u32 %v2192, 7
        %v2194 = vsub.s32 6, %v2193
        %v2195 = vrot.slane %v609, %v2194
        %v2196 = vmul.f32 %v2191, %v2162
        %v2197 = vmul.f32 %v2195, %v2163
        %v2198 = vadd.f32 %v2133, %v2196
        %v2199 = vadd.f32 %v2134, %v2197
        %v2200 = vlaneseq
        %v2201 = vshrl.u32 %v2200, 7
        %v2202 = vsub.s32 7, %v2201
        %v2203 = vrot.slane %v607, %v2202
        %v2204 = vlaneseq
        %v2205 = vshrl.u32 %v2204, 7
        %v2206 = vsub.s32 7, %v2205
        %v2207 = vrot.slane %v609, %v2206
        %v2208 = vmul.f32 %v2203, %v2162
        %v2209 = vmul.f32 %v2207, %v2163
        %v2210 = vadd.f32 %v2145, %v2208
        %v2211 = vadd.f32 %v2146, %v2209
        %2212 = vrot.lane.b32.xlu0 %v629, 94
        %v2213 = vpop.permute.xlu0 %2212
        %2214 = vrot.lane.b32.xlu0 %v630, 94
        %v2215 = vpop.permute.xlu0 %2214
        %vm2216 = vcmp.lt.s32.totalorder %v638, 94
        %v2217 = vsel %vm2216, %v2213, %v2215
        %v2218 = vsel %vm2216, %v2215, %v2213
        %v2219 = vlaneseq
        %v2220 = vshrl.u32 %v2219, 7
        %v2221 = vsub.s32 0, %v2220
        %v2222 = vrot.slane %v625, %v2221
        %v2223 = vlaneseq
        %v2224 = vshrl.u32 %v2223, 7
        %v2225 = vsub.s32 0, %v2224
        %v2226 = vrot.slane %v626, %v2225
        %v2227 = vmul.f32 %v2217, %v2222
        %v2228 = vmul.f32 %v2218, %v2226
        %v2229 = vlaneseq
        %v2230 = vshrl.u32 %v2229, 7
        %v2231 = vsub.s32 0, %v2230
        %v2232 = vrot.slane %v613, %v2231
        %v2233 = vlaneseq
        %v2234 = vshrl.u32 %v2233, 7
        %v2235 = vsub.s32 0, %v2234
        %v2236 = vrot.slane %v615, %v2235
        %v2237 = vmul.f32 %v2232, %v2227
        %v2238 = vmul.f32 %v2236, %v2228
        %v2239 = vadd.f32 %v2174, %v2237
        %v2240 = vadd.f32 %v2175, %v2238
        %v2241 = vlaneseq
        %v2242 = vshrl.u32 %v2241, 7
        %v2243 = vsub.s32 1, %v2242
        %v2244 = vrot.slane %v613, %v2243
        %v2245 = vlaneseq
        %v2246 = vshrl.u32 %v2245, 7
        %v2247 = vsub.s32 1, %v2246
        %v2248 = vrot.slane %v615, %v2247
        %v2249 = vmul.f32 %v2244, %v2227
        %v2250 = vmul.f32 %v2248, %v2228
        %v2251 = vadd.f32 %v2186, %v2249
        %v2252 = vadd.f32 %v2187, %v2250
        %v2253 = vlaneseq
        %v2254 = vshrl.u32 %v2253, 7
        %v2255 = vsub.s32 2, %v2254
        %v2256 = vrot.slane %v613, %v2255
        %v2257 = vlaneseq
        %v2258 = vshrl.u32 %v2257, 7
        %v2259 = vsub.s32 2, %v2258
        %v2260 = vrot.slane %v615, %v2259
        %v2261 = vmul.f32 %v2256, %v2227
        %v2262 = vmul.f32 %v2260, %v2228
        %v2263 = vadd.f32 %v2198, %v2261
        %v2264 = vadd.f32 %v2199, %v2262
        %v2265 = vlaneseq
        %v2266 = vshrl.u32 %v2265, 7
        %v2267 = vsub.s32 3, %v2266
        %v2268 = vrot.slane %v613, %v2267
        %v2269 = vlaneseq
        %v2270 = vshrl.u32 %v2269, 7
        %v2271 = vsub.s32 3, %v2270
        %v2272 = vrot.slane %v615, %v2271
        %v2273 = vmul.f32 %v2268, %v2227
        %v2274 = vmul.f32 %v2272, %v2228
        %v2275 = vadd.f32 %v2210, %v2273
        %v2276 = vadd.f32 %v2211, %v2274
        %v2279 = vrot.slane %v2251, 6
        %v2280 = vrot.slane %v2252, 6
        %v2285 = vrot.slane %v2263, 4
        %v2286 = vrot.slane %v2264, 4
        %v2291 = vrot.slane %v2275, 2
        %v2292 = vrot.slane %v2276, 2
        %v2295 = vsel %vm444, %v2239, %v2279
        %v2296 = vsel %vm444, %v2240, %v2280
        %v2297 = vsel %vm266, %v2295, %v2285
        %v2298 = vsel %vm266, %v2296, %v2286
        %v2299 = vsel %vm447, %v2297, %v2291
        %v2300 = vsel %vm447, %v2298, %v2292
        %v2302 = vsel %vm496, %v449, 0
        %2304 = vmatprep.subr.bf16.mxu0 %v325
        %2305 = vmatpush1.bf16.msra.mxu0 %v324
        %2306 = vmatprep.subr.bf16.mxu0 0
        %2307 = vmatpush1.bf16.msra.mxu0 0
        %2308 = vmatprep.subr.bf16.mxu0 0
        %2309 = vmatpush1.bf16.msra.mxu0 0
        %2310 = vmatprep.subr.bf16.mxu0 0
        %2311 = vmatpush1.bf16.msra.mxu0 0
        %2312 = vmatprep.subr.bf16.mxu0 0
        %2313 = vmatpush1.bf16.msra.mxu0 0
        %2314 = vmatprep.subr.bf16.mxu0 0
        %2315 = vmatpush1.bf16.msra.mxu0 0
        %2316 = vmatprep.subr.bf16.mxu0 0
        %2317 = vmatpush1.bf16.msra.mxu0 0
        %2318 = vmatprep.subr.bf16.mxu0 0
        %2319 = vmatpush1.bf16.msra.mxu0 0
        %2320 = vmatprep.subr.bf16.mxu0 0
        %2321 = vmatpush1.bf16.msra.mxu0 0
        %2322 = vmatprep.subr.bf16.mxu0 0
        %2323 = vmatpush1.bf16.msra.mxu0 0
        %2324 = vmatprep.subr.bf16.mxu0 0
        %2325 = vmatpush1.bf16.msra.mxu0 0
        %2326 = vmatprep.subr.bf16.mxu0 0
        %2327 = vmatpush1.bf16.msra.mxu0 0
        %2328 = vmatprep.subr.bf16.mxu0 0
        %2329 = vmatpush1.bf16.msra.mxu0 0
        %2330 = vmatprep.subr.bf16.mxu0 0
        %2331 = vmatpush1.bf16.msra.mxu0 0
        %2332 = vmatprep.subr.bf16.mxu0 0
        %2333 = vmatpush1.bf16.msra.mxu0 0
        %2334 = vmatprep.subr.bf16.mxu0 0
        %2335 = vmatpush1.bf16.msra.mxu0 0
        %2336 = vmatprep.mubr.bf16.mxu0 0
        %2337 = vmatmul.mubr.bf16.gmra.mrb[0].mxu0 %v2302
        %v2338 = vpop.f32.mrb[0].mxu0
        %v2339 = vadd.f32 %v2299, %v2338
        %v2340 = vpop.f32.mrb[0].mxu0
        %v2341 = vadd.f32 %v2300, %v2340
        %v2342 = vpop.f32.mrb[0].mxu0
        %v2343 = vpop.f32.mrb[0].mxu0
        %2344 = vdwg.mxu0
        %2345 = vst [vmem:[%s217] sm:$0xff] %v2339
        %2346 = vst [vmem:[%s217 + $0x8] sm:$0xff] %v2341
        %s2347 = sand.u32 %s137, 1
        %s2348 = scalar_lea.sflag [#allocation3], %s2347
        %s2349 = sand.u32 %s137, 1
        %s2350 = smul.addr %s2349, 16
        %s2351 = scalar_lea.vmem [#allocation2], %s2350
        // Predicated region
        $region41: #{tpu_custom_call.1} parent=39 // pred_check
          %p2352 = pneg %p147
        $region42: #{tpu_custom_call.1} parent=39 // pred_check_branch
          %2354 = sbr.rel (%p2352) target = $region44
        $region43: #{tpu_custom_call.1} parent=39 // pred_region
          %s2356 = ssub.s32 256, 256
          %2357 = vsyncadd %s2348, %s2356
          %s2358 = smul.addr %s19, 2
          %s2359 = smul.addr %s2358, 128
          %s2360 = scalar_lea.hbm %s5, %s2359
          %s2362 = sshll.u32 %s2351, 4
          %s2363 = int_to_ptr.vmem [resolvable:$true] %s2362
          %2365 = dma.vmem_to_hbm [thread:$0]  %s2363, 256, %s2360, %s2348
        $region44: #{tpu_custom_call.1} parent=39 // pred_fallthru
          _
      $region40: #{tpu_custom_call.1} parent=5 // pred_fallthru
        _
      %p2366 = scmp.le.s32.totalorder 2, %s14
      // Predicated region
      $region45: #{tpu_custom_call.1} parent=5 // pred_check
        %p2367 = pneg %p2366
      $region46: #{tpu_custom_call.1} parent=5 // pred_check_branch
        %2369 = sbr.rel (%p2367) target = $region48
      $region47: #{tpu_custom_call.1} parent=5 // pred_region
        %s2370 = ssub.s32 %s14, 2
        // Predicated region
        $region49: #{tpu_custom_call.1} parent=47 // pred_check
          %p2371 = pneg %p153
        $region50: #{tpu_custom_call.1} parent=47 // pred_check_branch
          %2373 = sbr.rel (%p2371) target = $region52
        $region51: #{tpu_custom_call.1} parent=47 // pred_region
          %s2374 = sand.u32 %s138, 1
          %s2375 = scalar_lea.sflag [#allocation3], %s2374
          %s2376 = sand.u32 %s138, 1
          %s2377 = smul.addr %s2376, 16
          %s2378 = scalar_lea.vmem [#allocation2], %s2377
          %2379 = dma.done %s2375, 256
        $region52: #{tpu_custom_call.1} parent=47 // pred_fallthru
          _
      $region48: #{tpu_custom_call.1} parent=5 // pred_fallthru
        _
    $region6: #{tpu_custom_call.1} parent=1 // loop_footer
      %s18 = sadd.s32 1, %s14
    $region7: #{tpu_custom_call.1} parent=1 // loop_footer_branch
      %13 = sbr.rel target = $region3
    $region8: #{tpu_custom_call.1} parent=1 // loop_exit
      _
    %2380 = vsyncpa [#allocation3], 1
    %s2381 = scalar_lea.sflag [#allocation3], 1
    %2382 = vsyncpa %s2381, 1

</llo_original>
